<compile_context>
chip_gen: v7x
topology: tpu7x:2x2x1
jax: 0.10.0
libtpu: 0.0.40
codegen_flags: <defaults>
</compile_context>

<pallas_src>
import functools
import numpy as np
import jax
import jax.numpy as jnp
from jax.experimental import pallas as pl
from jax.experimental.pallas import tpu as pltpu

# ---- configuration mirroring the module defaults (lmax of all irreps = 2) -------------------
LMAX = 2                        # irreps_in1.lmax == irreps_in2.lmax == irreps_out.lmax
RES_BETA = 2 * (LMAX + 1)       # 6   (module default)
RES_ALPHA = 2 * LMAX + 1        # 5   (module default)
G = RES_BETA * RES_ALPHA        # 30 grid points (flattened beta x alpha)

D_IN = (LMAX + 1) ** 2          # 9   "1x0e + 1x1o + 1x2e"
D_OUT = (LMAX + 1) ** 2         # 9
DS = (LMAX + 1) ** 2            # 9   scalar-channel SH coefficients (degrees 0..LMAX)
DV = LMAX ** 2                  # 4   per-Cartesian-component SH coeffs (vsh lmax = lmax-1)
D_VSH = DS + 3 * DV             # 21  VectorSphericalHarmonics.irreps dim (scalar_interaction=True)

# TODO(synk): e3nn's o3.Linear is block-diagonal per-(l,parity) and VectorSphericalHarmonics uses
# the irreducible VSH basis; here the linears are dense maps of the same shapes and the vector
# field is expanded per Cartesian component in real scalar SH (synthetic deterministic weights).


def _real_sh_basis(lmax, res_beta, res_alpha):
    """Orthonormal real spherical harmonics (l <= 2) on a Gauss-Legendre(beta) x uniform(alpha)
    S2 grid, plus quadrature weights. Returns Y[(lmax+1)^2, B, A], w[B, A]."""
    assert lmax <= 2
    z_nodes, gl_w = np.polynomial.legendre.leggauss(res_beta)
    alpha = 2.0 * np.pi * np.arange(res_alpha) / res_alpha
    ones_a = np.ones((1, res_alpha))
    z = z_nodes[:, None] * ones_a
    sb = np.sqrt(np.maximum(0.0, 1.0 - z_nodes[:, None] ** 2))
    x = sb * np.cos(alpha)[None, :]
    y = sb * np.sin(alpha)[None, :]
    Ys = [0.5 * np.sqrt(1.0 / np.pi) * np.ones_like(z)]
    if lmax >= 1:
        c1 = np.sqrt(3.0 / (4.0 * np.pi))
        Ys += [c1 * y, c1 * z, c1 * x]
    if lmax >= 2:
        c2 = 0.5 * np.sqrt(15.0 / np.pi)
        Ys += [c2 * x * y, c2 * y * z,
               0.25 * np.sqrt(5.0 / np.pi) * (3.0 * z ** 2 - 1.0),
               c2 * x * z, 0.25 * np.sqrt(15.0 / np.pi) * (x ** 2 - y ** 2)]
    Y = np.stack(Ys, axis=0)
    w = gl_w[:, None] * (2.0 * np.pi / res_alpha) * ones_a
    return Y.astype(np.float32), w.astype(np.float32)


# ---------------------------------- Pallas kernel --------------------------------------------
def _gaunt_kernel(x1_ref, x2_ref, w1_ref, w2_ref, pout_ref, o_ref, *, apply_activation):
    f32 = jnp.float32
    x1 = x1_ref[...]                                    # [D_IN, TN]  (batch on lanes)
    x2 = x2_ref[...]

    # fused (linear -> to_vector_signal): channel-major signals on the grid, batch on lanes
    s1 = [jnp.dot(w1_ref[c], x1, preferred_element_type=f32) for c in range(4)]   # 4 x [G, TN]
    s2 = [jnp.dot(w2_ref[c], x2, preferred_element_type=f32) for c in range(4)]

    # pointwise Gaunt interaction on the grid: scalar*scalar and cross(vector, vector)
    p_s = s1[0] * s2[0]
    p_v = [s1[2] * s2[3] - s1[3] * s2[2],
           s1[3] * s2[1] - s1[1] * s2[3],
           s1[1] * s2[2] - s1[2] * s2[1]]

    if apply_activation:   # SELU(scalar) gates the vector channels; scalar channel passes through
        alpha, scale = 1.6732632423543772, 1.0507009873554805
        act = scale * jnp.where(p_s > 0, p_s,
                                alpha * (jnp.exp(jnp.minimum(p_s, 0.0)) - 1.0))
        p_v = [act * c for c in p_v]

    # fused (from_vector_signal -> *100 -> linear_out)
    out = jnp.dot(pout_ref[0], p_s, preferred_element_type=f32)                    # [D_OUT, TN]
    for k in range(3):
        out += jnp.dot(pout_ref[k + 1], p_v[k], preferred_element_type=f32)
    o_ref[...] = out                                                               # lane-dense store


# --------------------------- host-side fusion of the tiny weight chains ----------------------
def _fuse_weights(params):
    w1, w2, ys, yv, pys, pyv, wout = (params[k] for k in
                                      ("w1", "w2", "ys", "yv", "pys", "pyv", "wout"))

    def in_side(w):                                    # [4, G, D_IN], channel 0 = scalar, 1..3 = xyz
        ch = [(w[:, :DS] @ ys).T]
        ch += [(w[:, DS + k * DV: DS + (k + 1) * DV] @ yv).T for k in range(3)]
        return jnp.stack(ch, axis=0)

    def out_side():                                    # [4, D_OUT, G], *100 folded in
        ch = [(100.0 * (pys @ wout[:DS])).T]
        ch += [(100.0 * (pyv @ wout[DS + k * DV: DS + (k + 1) * DV])).T for k in range(3)]
        return jnp.stack(ch, axis=0)

    return in_side(w1), in_side(w2), out_side()


def vector_gaunt_tp_s2grid(x1, x2, params, *, apply_activation=False, tn=512):
    assert tn % 128 == 0, "batch tile must be lane-dense (multiple of 128)"
    n = x1.shape[0]
    n_pad = ((n + tn - 1) // tn) * tn

    w1t, w2t, pout = _fuse_weights(params)

    # feature-major: batch on the lane axis; zero-pad batch to a multiple of tn (zeros stay zeros)
    x1t = jnp.pad(x1.T, ((0, 0), (0, n_pad - n)))
    x2t = jnp.pad(x2.T, ((0, 0), (0, n_pad - n)))

    def full(a):
        return pl.BlockSpec(a.shape, lambda i: (0,) * a.ndim)

    flops = n_pad * (2 * 8 * G * D_IN + 2 * 4 * D_OUT * G + 12 * G)
    bytes_accessed = 4 * (n_pad * (2 * D_IN + D_OUT) + w1t.size + w2t.size + pout.size)
    cost = pl.CostEstimate(flops=flops,
                           transcendentals=n_pad * G if apply_activation else 0,
                           bytes_accessed=bytes_accessed)

    kernel = functools.partial(_gaunt_kernel, apply_activation=apply_activation)
    out_t = pl.pallas_call(
        kernel,
        out_shape=jax.ShapeDtypeStruct((D_OUT, n_pad), jnp.float32),
        grid=(n_pad // tn,),
        in_specs=[pl.BlockSpec((D_IN, tn), lambda i: (0, i)),
                  pl.BlockSpec((D_IN, tn), lambda i: (0, i)),
                  full(w1t), full(w2t), full(pout)],
        out_specs=pl.BlockSpec((D_OUT, tn), lambda i: (0, i)),
        compiler_params=pltpu.CompilerParams(dimension_semantics=("parallel",)),
        cost_estimate=cost,
    )(x1t, x2t, w1t, w2t, pout)
    return out_t[:, :n].T


# --------------------------- deterministic parameter construction ----------------------------
def init_params(key):
    Y, w = _real_sh_basis(LMAX, RES_BETA, RES_ALPHA)       # [DS, B, A], [B, A]
    wflat = w.reshape(G)
    ys = jnp.asarray(Y.reshape(DS, G))                     # to_vector_signal scalar basis   [DS, G]
    yv = jnp.asarray(Y[:DV].reshape(DV, G))                # to_vector_signal vector basis   [DV, G]
    pys = jnp.asarray((Y.reshape(DS, G) * wflat).T)        # from_vector_signal (quadrature) [G, DS]
    pyv = jnp.asarray((Y[:DV].reshape(DV, G) * wflat).T)   # [G, DV]
    k1, k2, k3 = jax.random.split(key, 3)
    w1 = jax.random.normal(k1, (D_IN, D_VSH), jnp.float32) / np.sqrt(D_IN)
    w2 = jax.random.normal(k2, (D_IN, D_VSH), jnp.float32) / np.sqrt(D_IN)
    wout = jax.random.normal(k3, (D_VSH, D_OUT), jnp.float32) / np.sqrt(D_VSH)
    return dict(w1=w1, w2=w2, ys=ys, yv=yv, pys=pys, pyv=pyv, wout=wout)


# ------------------------------- plain-JAX reference for checking ----------------------------
def reference(x1, x2, p, apply_activation=False):
    h1, h2 = x1 @ p["w1"], x2 @ p["w2"]

    def to_sig(h):
        s = h[:, :DS] @ p["ys"]
        v = [h[:, DS + k * DV: DS + (k + 1) * DV] @ p["yv"] for k in range(3)]
        return s, v

    s1, v1 = to_sig(h1)
    s2, v2 = to_sig(h2)
    ps = s1 * s2
    pv = [v1[1] * v2[2] - v1[2] * v2[1],
          v1[2] * v2[0] - v1[0] * v2[2],
          v1[0] * v2[1] - v1[1] * v2[0]]
    if apply_activation:
        pv = [jax.nn.selu(ps) * c for c in pv]
    out = ((ps @ p["pys"]) * 100.0) @ p["wout"][:DS]
    for k in range(3):
        out = out + ((pv[k] @ p["pyv"]) * 100.0) @ p["wout"][DS + k * DV: DS + (k + 1) * DV]
    return out


if __name__ == "__main__":
    key = jax.random.PRNGKey(0)
    kp, kx1, kx2 = jax.random.split(key, 3)
    params = init_params(kp)

    N = 1000   # not a multiple of the tile -> exercises padding; >= 2 grid steps at tn=512
    x1 = jax.random.normal(kx1, (N, D_IN), jnp.float32)
    x2 = jax.random.normal(kx2, (N, D_IN), jnp.float32)

    for act in (False, True):
        out = jax.block_until_ready(
            vector_gaunt_tp_s2grid(x1, x2, params, apply_activation=act, tn=512))
        ref = reference(x1, x2, params, apply_activation=act)
        assert out.shape == (N, D_OUT) and out.dtype == jnp.float32
        err = float(jnp.max(jnp.abs(out - ref)))
        scale = float(jnp.max(jnp.abs(ref))) + 1e-6
        assert err / scale < 2e-2, (act, err, scale)

    print("KERNEL_OK")
</pallas_src>

<mosaic_0001>
module attributes {stable_mosaic.version = 11 : i64} {
  func.func @_gaunt_kernel(%arg0: i32, %arg1: memref<9x512xf32, #tpu.memory_space<vmem>>, %arg2: memref<9x512xf32, #tpu.memory_space<vmem>>, %arg3: memref<4x30x9xf32, #tpu.memory_space<vmem>>, %arg4: memref<4x30x9xf32, #tpu.memory_space<vmem>>, %arg5: memref<4x9x30xf32, #tpu.memory_space<vmem>>, %arg6: memref<9x512xf32, #tpu.memory_space<vmem>>) attributes {dimension_semantics = [#tpu.dimension_semantics<parallel>], iteration_bounds = array<i64: 2>, scalar_prefetch = 0 : i64, scratch_operands = 0 : i64, tpu.core_type = #tpu.core_type<tc>, window_params = [{transform_indices = @transform_0, window_bounds = array<i64: 9, 512>}, {transform_indices = @transform_1, window_bounds = array<i64: 9, 512>}, {pipeline_mode = #tpu.pipeline_mode<synchronous>, transform_indices = @transform_2, window_bounds = array<i64: 4, 30, 9>}, {pipeline_mode = #tpu.pipeline_mode<synchronous>, transform_indices = @transform_3, window_bounds = array<i64: 4, 30, 9>}, {pipeline_mode = #tpu.pipeline_mode<synchronous>, transform_indices = @transform_4, window_bounds = array<i64: 4, 9, 30>}, {transform_indices = @transform_5, window_bounds = array<i64: 9, 512>}]} {
    %c0 = arith.constant 0 : index
    %c0_0 = arith.constant 0 : index
    %0 = vector.load %arg1[%c0, %c0_0] : memref<9x512xf32, #tpu.memory_space<vmem>>, vector<9x512xf32>
    %c0_1 = arith.constant 0 : index
    %c0_2 = arith.constant 0 : index
    %1 = vector.load %arg2[%c0_1, %c0_2] : memref<9x512xf32, #tpu.memory_space<vmem>>, vector<9x512xf32>
    %c0_3 = arith.constant 0 : index
    %c0_4 = arith.constant 0 : index
    %c0_5 = arith.constant 0 : index
    %2 = vector.load %arg3[%c0_3, %c0_4, %c0_5] : memref<4x30x9xf32, #tpu.memory_space<vmem>>, vector<1x30x9xf32>
    %3 = vector.shape_cast %2 : vector<1x30x9xf32> to vector<30x9xf32>
    %cst = arith.constant dense<0.000000e+00> : vector<30x512xf32>
    %4 = tpu.matmul %3, %0, %cst {dimension_numbers = #tpu.dot_dimension_numbers<[1], [0], [0], [1], [0, 0, 1, 1], [], []>} : vector<30x9xf32>, vector<9x512xf32>, vector<30x512xf32> -> vector<30x512xf32>
    %c1 = arith.constant 1 : index
    %c0_6 = arith.constant 0 : index
    %c0_7 = arith.constant 0 : index
    %5 = vector.load %arg3[%c1, %c0_6, %c0_7] : memref<4x30x9xf32, #tpu.memory_space<vmem>>, vector<1x30x9xf32>
    %6 = vector.shape_cast %5 : vector<1x30x9xf32> to vector<30x9xf32>
    %cst_8 = arith.constant dense<0.000000e+00> : vector<30x512xf32>
    %7 = tpu.matmul %6, %0, %cst_8 {dimension_numbers = #tpu.dot_dimension_numbers<[1], [0], [0], [1], [0, 0, 1, 1], [], []>} : vector<30x9xf32>, vector<9x512xf32>, vector<30x512xf32> -> vector<30x512xf32>
    %c2 = arith.constant 2 : index
    %c0_9 = arith.constant 0 : index
    %c0_10 = arith.constant 0 : index
    %8 = vector.load %arg3[%c2, %c0_9, %c0_10] : memref<4x30x9xf32, #tpu.memory_space<vmem>>, vector<1x30x9xf32>
    %9 = vector.shape_cast %8 : vector<1x30x9xf32> to vector<30x9xf32>
    %cst_11 = arith.constant dense<0.000000e+00> : vector<30x512xf32>
    %10 = tpu.matmul %9, %0, %cst_11 {dimension_numbers = #tpu.dot_dimension_numbers<[1], [0], [0], [1], [0, 0, 1, 1], [], []>} : vector<30x9xf32>, vector<9x512xf32>, vector<30x512xf32> -> vector<30x512xf32>
    %c3 = arith.constant 3 : index
    %c0_12 = arith.constant 0 : index
    %c0_13 = arith.constant 0 : index
    %11 = vector.load %arg3[%c3, %c0_12, %c0_13] : memref<4x30x9xf32, #tpu.memory_space<vmem>>, vector<1x30x9xf32>
    %12 = vector.shape_cast %11 : vector<1x30x9xf32> to vector<30x9xf32>
    %cst_14 = arith.constant dense<0.000000e+00> : vector<30x512xf32>
    %13 = tpu.matmul %12, %0, %cst_14 {dimension_numbers = #tpu.dot_dimension_numbers<[1], [0], [0], [1], [0, 0, 1, 1], [], []>} : vector<30x9xf32>, vector<9x512xf32>, vector<30x512xf32> -> vector<30x512xf32>
    %c0_15 = arith.constant 0 : index
    %c0_16 = arith.constant 0 : index
    %c0_17 = arith.constant 0 : index
    %14 = vector.load %arg4[%c0_15, %c0_16, %c0_17] : memref<4x30x9xf32, #tpu.memory_space<vmem>>, vector<1x30x9xf32>
    %15 = vector.shape_cast %14 : vector<1x30x9xf32> to vector<30x9xf32>
    %cst_18 = arith.constant dense<0.000000e+00> : vector<30x512xf32>
    %16 = tpu.matmul %15, %1, %cst_18 {dimension_numbers = #tpu.dot_dimension_numbers<[1], [0], [0], [1], [0, 0, 1, 1], [], []>} : vector<30x9xf32>, vector<9x512xf32>, vector<30x512xf32> -> vector<30x512xf32>
    %c1_19 = arith.constant 1 : index
    %c0_20 = arith.constant 0 : index
    %c0_21 = arith.constant 0 : index
    %17 = vector.load %arg4[%c1_19, %c0_20, %c0_21] : memref<4x30x9xf32, #tpu.memory_space<vmem>>, vector<1x30x9xf32>
    %18 = vector.shape_cast %17 : vector<1x30x9xf32> to vector<30x9xf32>
    %cst_22 = arith.constant dense<0.000000e+00> : vector<30x512xf32>
    %19 = tpu.matmul %18, %1, %cst_22 {dimension_numbers = #tpu.dot_dimension_numbers<[1], [0], [0], [1], [0, 0, 1, 1], [], []>} : vector<30x9xf32>, vector<9x512xf32>, vector<30x512xf32> -> vector<30x512xf32>
    %c2_23 = arith.constant 2 : index
    %c0_24 = arith.constant 0 : index
    %c0_25 = arith.constant 0 : index
    %20 = vector.load %arg4[%c2_23, %c0_24, %c0_25] : memref<4x30x9xf32, #tpu.memory_space<vmem>>, vector<1x30x9xf32>
    %21 = vector.shape_cast %20 : vector<1x30x9xf32> to vector<30x9xf32>
    %cst_26 = arith.constant dense<0.000000e+00> : vector<30x512xf32>
    %22 = tpu.matmul %21, %1, %cst_26 {dimension_numbers = #tpu.dot_dimension_numbers<[1], [0], [0], [1], [0, 0, 1, 1], [], []>} : vector<30x9xf32>, vector<9x512xf32>, vector<30x512xf32> -> vector<30x512xf32>
    %c3_27 = arith.constant 3 : index
    %c0_28 = arith.constant 0 : index
    %c0_29 = arith.constant 0 : index
    %23 = vector.load %arg4[%c3_27, %c0_28, %c0_29] : memref<4x30x9xf32, #tpu.memory_space<vmem>>, vector<1x30x9xf32>
    %24 = vector.shape_cast %23 : vector<1x30x9xf32> to vector<30x9xf32>
    %cst_30 = arith.constant dense<0.000000e+00> : vector<30x512xf32>
    %25 = tpu.matmul %24, %1, %cst_30 {dimension_numbers = #tpu.dot_dimension_numbers<[1], [0], [0], [1], [0, 0, 1, 1], [], []>} : vector<30x9xf32>, vector<9x512xf32>, vector<30x512xf32> -> vector<30x512xf32>
    %26 = arith.mulf %4, %16 : vector<30x512xf32>
    %27 = arith.mulf %10, %25 : vector<30x512xf32>
    %28 = arith.mulf %13, %22 : vector<30x512xf32>
    %29 = arith.subf %27, %28 : vector<30x512xf32>
    %30 = arith.mulf %13, %19 : vector<30x512xf32>
    %31 = arith.mulf %7, %25 : vector<30x512xf32>
    %32 = arith.subf %30, %31 : vector<30x512xf32>
    %33 = arith.mulf %7, %22 : vector<30x512xf32>
    %34 = arith.mulf %10, %19 : vector<30x512xf32>
    %35 = arith.subf %33, %34 : vector<30x512xf32>
    %c0_31 = arith.constant 0 : index
    %c0_32 = arith.constant 0 : index
    %c0_33 = arith.constant 0 : index
    %36 = vector.load %arg5[%c0_31, %c0_32, %c0_33] : memref<4x9x30xf32, #tpu.memory_space<vmem>>, vector<1x9x30xf32>
    %37 = vector.shape_cast %36 : vector<1x9x30xf32> to vector<9x30xf32>
    %cst_34 = arith.constant dense<0.000000e+00> : vector<9x512xf32>
    %38 = tpu.matmul %37, %26, %cst_34 {dimension_numbers = #tpu.dot_dimension_numbers<[1], [0], [0], [1], [0, 0, 1, 1], [], []>} : vector<9x30xf32>, vector<30x512xf32>, vector<9x512xf32> -> vector<9x512xf32>
    %c1_35 = arith.constant 1 : index
    %c0_36 = arith.constant 0 : index
    %c0_37 = arith.constant 0 : index
    %39 = vector.load %arg5[%c1_35, %c0_36, %c0_37] : memref<4x9x30xf32, #tpu.memory_space<vmem>>, vector<1x9x30xf32>
    %40 = vector.shape_cast %39 : vector<1x9x30xf32> to vector<9x30xf32>
    %cst_38 = arith.constant dense<0.000000e+00> : vector<9x512xf32>
    %41 = tpu.matmul %40, %29, %cst_38 {dimension_numbers = #tpu.dot_dimension_numbers<[1], [0], [0], [1], [0, 0, 1, 1], [], []>} : vector<9x30xf32>, vector<30x512xf32>, vector<9x512xf32> -> vector<9x512xf32>
    %42 = arith.addf %38, %41 : vector<9x512xf32>
    %c2_39 = arith.constant 2 : index
    %c0_40 = arith.constant 0 : index
    %c0_41 = arith.constant 0 : index
    %43 = vector.load %arg5[%c2_39, %c0_40, %c0_41] : memref<4x9x30xf32, #tpu.memory_space<vmem>>, vector<1x9x30xf32>
    %44 = vector.shape_cast %43 : vector<1x9x30xf32> to vector<9x30xf32>
    %cst_42 = arith.constant dense<0.000000e+00> : vector<9x512xf32>
    %45 = tpu.matmul %44, %32, %cst_42 {dimension_numbers = #tpu.dot_dimension_numbers<[1], [0], [0], [1], [0, 0, 1, 1], [], []>} : vector<9x30xf32>, vector<30x512xf32>, vector<9x512xf32> -> vector<9x512xf32>
    %46 = arith.addf %42, %45 : vector<9x512xf32>
    %c3_43 = arith.constant 3 : index
    %c0_44 = arith.constant 0 : index
    %c0_45 = arith.constant 0 : index
    %47 = vector.load %arg5[%c3_43, %c0_44, %c0_45] : memref<4x9x30xf32, #tpu.memory_space<vmem>>, vector<1x9x30xf32>
    %48 = vector.shape_cast %47 : vector<1x9x30xf32> to vector<9x30xf32>
    %cst_46 = arith.constant dense<0.000000e+00> : vector<9x512xf32>
    %49 = tpu.matmul %48, %35, %cst_46 {dimension_numbers = #tpu.dot_dimension_numbers<[1], [0], [0], [1], [0, 0, 1, 1], [], []>} : vector<9x30xf32>, vector<30x512xf32>, vector<9x512xf32> -> vector<9x512xf32>
    %50 = arith.addf %46, %49 : vector<9x512xf32>
    %c0_47 = arith.constant 0 : index
    %c0_48 = arith.constant 0 : index
    %51 = vector.load %arg6[%c0_47, %c0_48] : memref<9x512xf32, #tpu.memory_space<vmem>>, vector<9x512xf32>
    tpu.vector_store %arg6[%c0_47, %c0_48], %50 {strides = array<i32>} : memref<9x512xf32, #tpu.memory_space<vmem>>, vector<9x512xf32>,
    return
  }
  func.func @transform_0(%arg0: i32) -> (i32, i32) {
    %c0_i32 = arith.constant 0 : i32
    %c0_i32_0 = arith.constant 0 : i32
    return %c0_i32, %arg0 : i32, i32
  }
  func.func @transform_1(%arg0: i32) -> (i32, i32) {
    %c0_i32 = arith.constant 0 : i32
    %c0_i32_0 = arith.constant 0 : i32
    return %c0_i32, %arg0 : i32, i32
  }
  func.func @transform_2(%arg0: i32) -> (i32, i32, i32) {
    %c0_i32 = arith.constant 0 : i32
    %c0_i32_0 = arith.constant 0 : i32
    %c0_i32_1 = arith.constant 0 : i32
    %c0_i32_2 = arith.constant 0 : i32
    return %c0_i32, %c0_i32_0, %c0_i32_1 : i32, i32, i32
  }
  func.func @transform_3(%arg0: i32) -> (i32, i32, i32) {
    %c0_i32 = arith.constant 0 : i32
    %c0_i32_0 = arith.constant 0 : i32
    %c0_i32_1 = arith.constant 0 : i32
    %c0_i32_2 = arith.constant 0 : i32
    return %c0_i32, %c0_i32_0, %c0_i32_1 : i32, i32, i32
  }
  func.func @transform_4(%arg0: i32) -> (i32, i32, i32) {
    %c0_i32 = arith.constant 0 : i32
    %c0_i32_0 = arith.constant 0 : i32
    %c0_i32_1 = arith.constant 0 : i32
    %c0_i32_2 = arith.constant 0 : i32
    return %c0_i32, %c0_i32_0, %c0_i32_1 : i32, i32, i32
  }
  func.func @transform_5(%arg0: i32) -> (i32, i32) {
    %c0_i32 = arith.constant 0 : i32
    %c0_i32_0 = arith.constant 0 : i32
    return %c0_i32, %arg0 : i32, i32
  }
}

</mosaic_0001>

<llo_original>
// kernel: tpu_custom_call.1
$region0: #{tpu_custom_call.1}
  #allocation0 [shape = 'u32[]', space=smem, size = 0x4, offset = 0x4, fixed_abs, tag = 'smem constant byte address 0x4 - core index']
  #allocation1 [shape = 'u32[144,128]{1,0:T(1,128)}', space=vmem, size = 0x12000, scoped, tag = 'internal scratch']
  %s0 = inlined_call_operand.vmem [shape: f32[9,1024], index: 0, kind: input, shape index: {}]
  %s1 = inlined_call_operand.vmem [shape: f32[9,1024], index: 1, kind: input, shape index: {}]
  %s2 = inlined_call_operand.vmem [shape: f32[4,30,9], index: 2, kind: input, shape index: {}]
  %s3 = inlined_call_operand.vmem [shape: f32[4,30,9], index: 3, kind: input, shape index: {}]
  %s4 = inlined_call_operand.vmem [shape: f32[4,9,30], index: 4, kind: input, shape index: {}]
  %s5 = inlined_call_operand.hbm [shape: f32[9,1024], index: 5, kind: output, shape index: {}]
  %s6 = sld [smem:[#allocation0]]
  $region99: #{tpu_custom_call.1} parent=0
    _
  %s8 = ssub.s32 1, %s6
  %s9 = scalar_select 0, %s8, %s6
  $region1: #{tpu_custom_call.1} parent=0
    #allocation2 [shape = 'u8[65536]{0}', space=vmem, size = 0x10000, scoped, tag = 'input window, operand 0']
    #allocation3 [shape = 'u8[65536]{0}', space=vmem, size = 0x10000, scoped, tag = 'input window, operand 1']
    #allocation4 [shape = 'u8[65536]{0}', space=vmem, size = 0x10000, scoped, tag = 'output window, operand 0']
    #allocation5 [shape = 's32[2]{0}', space=sflag, size = 0x8, scoped, tag = 'scoped memory for tpu_custom_call.1']
    %10 = vsyncpa [#allocation5], 0
    %s11 = scalar_lea.sflag [#allocation5], 1
    %12 = vsyncpa %s11, 0
    loop: start=0, step=1, limit=4
    $region2: #{tpu_custom_call.1} parent=1 // loop_pre_header
      _
    $region3: #{tpu_custom_call.1} parent=1 // loop_header
      %s14 = sphi 0, %s18
      %p15 = scmp.ge.s32.totalorder %s14, 4
      %s24 = sphi 0, %s26
      %s27 = sphi 0, %s24
      %s28 = sphi 0, %s27
      %s44 = sphi 0, %s28
      %s50 = sphi 0, %s52
      %s53 = sphi 0, %s50
      %s54 = sphi 0, %s53
      %s70 = sphi 0, %s54
      %s74 = sphi 0, %s74
      %s76 = sphi 0, %s74
      %s77 = sphi 0, %s76
      %s91 = sphi 0, %s77
      %s95 = sphi 0, %s95
      %s97 = sphi 0, %s95
      %s98 = sphi 0, %s97
      %s112 = sphi 0, %s98
      %s116 = sphi 0, %s116
      %s118 = sphi 0, %s116
      %s119 = sphi 0, %s118
      %s133 = sphi 0, %s119
      %s139 = sphi 0, %s141
      %s142 = sphi 0, %s139
      %s143 = sphi 0, %s142
      %s159 = sphi 0, %s143
    $region4: #{tpu_custom_call.1} parent=1 // loop_header_branch
      %17 = sbr.rel (%p15) target = $region8
    $region5: #{tpu_custom_call.1} parent=1 // loop_body
      %s19 = ssub.s32 %s14, 1
      %s20 = ssub.s32 %s14, 2
      %s21 = sadd.s32 %s14, 1
      %s22 = ssub.s32 %s14, %s21
      %p23 = scmp.eq.s32.totalorder %s22, 0
      %s25 = sadd.s32 %s24, 1
      %s26 = scalar_select %p23, %s24, %s25
      %p29 = pneg %p23
      %p30 = scmp.eq.s32.totalorder %s14, 1
      %p31 = por %p29, %p30
      %p32 = scmp.ne.s32.totalorder %s24, %s27
      %p33 = scmp.eq.s32.totalorder %s14, 0
      %p34 = por %p32, %p33
      %p35 = scmp.ne.s32.totalorder %s24, %s27
      %p36 = scmp.eq.s32.totalorder %s19, 1
      %p37 = por %p35, %p36
      %p38 = scmp.ne.s32.totalorder %s27, %s28
      %p39 = scmp.eq.s32.totalorder %s19, 0
      %p40 = por %p38, %p39
      %p41 = scmp.ne.s32.totalorder %s27, %s28
      %p42 = scmp.eq.s32.totalorder %s20, 1
      %p43 = por %p41, %p42
      %p45 = scmp.ne.s32.totalorder %s28, %s44
      %p46 = scmp.eq.s32.totalorder %s20, 0
      %p47 = por %p45, %p46
      %s48 = ssub.s32 %s14, %s21
      %p49 = scmp.eq.s32.totalorder %s48, 0
      %s51 = sadd.s32 %s50, 1
      %s52 = scalar_select %p49, %s50, %s51
      %p55 = pneg %p49
      %p56 = scmp.eq.s32.totalorder %s14, 1
      %p57 = por %p55, %p56
      %p58 = scmp.ne.s32.totalorder %s50, %s53
      %p59 = scmp.eq.s32.totalorder %s14, 0
      %p60 = por %p58, %p59
      %p61 = scmp.ne.s32.totalorder %s50, %s53
      %p62 = scmp.eq.s32.totalorder %s19, 1
      %p63 = por %p61, %p62
      %p64 = scmp.ne.s32.totalorder %s53, %s54
      %p65 = scmp.eq.s32.totalorder %s19, 0
      %p66 = por %p64, %p65
      %p67 = scmp.ne.s32.totalorder %s53, %s54
      %p68 = scmp.eq.s32.totalorder %s20, 1
      %p69 = por %p67, %p68
      %p71 = scmp.ne.s32.totalorder %s54, %s70
      %p72 = scmp.eq.s32.totalorder %s20, 0
      %p73 = por %p71, %p72
      %s75 = sadd.s32 %s74, 1
      %p78 = scmp.eq.s32.totalorder %s14, 1
      %p79 = scmp.ne.s32.totalorder %s74, %s76
      %p80 = scmp.eq.s32.totalorder %s14, 0
      %p81 = por %p79, %p80
      %p82 = scmp.ne.s32.totalorder %s74, %s76
      %p83 = scmp.eq.s32.totalorder %s19, 1
      %p84 = por %p82, %p83
      %p85 = scmp.ne.s32.totalorder %s76, %s77
      %p86 = scmp.eq.s32.totalorder %s19, 0
      %p87 = por %p85, %p86
      %p88 = scmp.ne.s32.totalorder %s76, %s77
      %p89 = scmp.eq.s32.totalorder %s20, 1
      %p90 = por %p88, %p89
      %p92 = scmp.ne.s32.totalorder %s77, %s91
      %p93 = scmp.eq.s32.totalorder %s20, 0
      %p94 = por %p92, %p93
      %s96 = sadd.s32 %s95, 1
      %p99 = scmp.eq.s32.totalorder %s14, 1
      %p100 = scmp.ne.s32.totalorder %s95, %s97
      %p101 = scmp.eq.s32.totalorder %s14, 0
      %p102 = por %p100, %p101
      %p103 = scmp.ne.s32.totalorder %s95, %s97
      %p104 = scmp.eq.s32.totalorder %s19, 1
      %p105 = por %p103, %p104
      %p106 = scmp.ne.s32.totalorder %s97, %s98
      %p107 = scmp.eq.s32.totalorder %s19, 0
      %p108 = por %p106, %p107
      %p109 = scmp.ne.s32.totalorder %s97, %s98
      %p110 = scmp.eq.s32.totalorder %s20, 1
      %p111 = por %p109, %p110
      %p113 = scmp.ne.s32.totalorder %s98, %s112
      %p114 = scmp.eq.s32.totalorder %s20, 0
      %p115 = por %p113, %p114
      %s117 = sadd.s32 %s116, 1
      %p120 = scmp.eq.s32.totalorder %s14, 1
      %p121 = scmp.ne.s32.totalorder %s116, %s118
      %p122 = scmp.eq.s32.totalorder %s14, 0
      %p123 = por %p121, %p122
      %p124 = scmp.ne.s32.totalorder %s116, %s118
      %p125 = scmp.eq.s32.totalorder %s19, 1
      %p126 = por %p124, %p125
      %p127 = scmp.ne.s32.totalorder %s118, %s119
      %p128 = scmp.eq.s32.totalorder %s19, 0
      %p129 = por %p127, %p128
      %p130 = scmp.ne.s32.totalorder %s118, %s119
      %p131 = scmp.eq.s32.totalorder %s20, 1
      %p132 = por %p130, %p131
      %p134 = scmp.ne.s32.totalorder %s119, %s133
      %p135 = scmp.eq.s32.totalorder %s20, 0
      %p136 = por %p134, %p135
      %s137 = ssub.s32 %s14, %s21
      %p138 = scmp.eq.s32.totalorder %s137, 0
      %s140 = sadd.s32 %s139, 1
      %s141 = scalar_select %p138, %s139, %s140
      %p144 = pneg %p138
      %p145 = scmp.eq.s32.totalorder %s14, 1
      %p146 = por %p144, %p145
      %p147 = scmp.ne.s32.totalorder %s139, %s142
      %p148 = scmp.eq.s32.totalorder %s14, 0
      %p149 = por %p147, %p148
      %p150 = scmp.ne.s32.totalorder %s139, %s142
      %p151 = scmp.eq.s32.totalorder %s19, 1
      %p152 = por %p150, %p151
      %p153 = scmp.ne.s32.totalorder %s142, %s143
      %p154 = scmp.eq.s32.totalorder %s19, 0
      %p155 = por %p153, %p154
      %p156 = scmp.ne.s32.totalorder %s142, %s143
      %p157 = scmp.eq.s32.totalorder %s20, 1
      %p158 = por %p156, %p157
      %p160 = scmp.ne.s32.totalorder %s143, %s159
      %p161 = scmp.eq.s32.totalorder %s20, 0
      %p162 = por %p160, %p161
      %p163 = scmp.le.s32.totalorder 1, %s14
      %p164 = scmp.lt.s32.totalorder %s14, 3
      %p165 = pnand %p163, %p164
      %p166 = pneg %p165
      // Predicated region
      $region9: #{tpu_custom_call.1} parent=5 // pred_check
        _
      $region10: #{tpu_custom_call.1} parent=5 // pred_check_branch
        %168 = sbr.rel (%p165) target = $region12
      $region11: #{tpu_custom_call.1} parent=5 // pred_region
        %s169 = ssub.s32 %s14, 1
        // Predicated region
        $region13: #{tpu_custom_call.1} parent=11 // pred_check
          %p170 = pneg %p87
        $region14: #{tpu_custom_call.1} parent=11 // pred_check_branch
          %172 = sbr.rel (%p170) target = $region16
        $region15: #{tpu_custom_call.1} parent=11 // pred_region
          _
        $region16: #{tpu_custom_call.1} parent=11 // pred_fallthru
          _
        // Predicated region
        $region17: #{tpu_custom_call.1} parent=11 // pred_check
          %p173 = pneg %p108
        $region18: #{tpu_custom_call.1} parent=11 // pred_check_branch
          %175 = sbr.rel (%p173) target = $region20
        $region19: #{tpu_custom_call.1} parent=11 // pred_region
          _
        $region20: #{tpu_custom_call.1} parent=11 // pred_fallthru
          _
        // Predicated region
        $region21: #{tpu_custom_call.1} parent=11 // pred_check
          %p176 = pneg %p129
        $region22: #{tpu_custom_call.1} parent=11 // pred_check_branch
          %178 = sbr.rel (%p176) target = $region24
        $region23: #{tpu_custom_call.1} parent=11 // pred_region
          _
        $region24: #{tpu_custom_call.1} parent=11 // pred_fallthru
          _
      $region12: #{tpu_custom_call.1} parent=5 // pred_fallthru
        _
      %p179 = scmp.lt.s32.totalorder %s14, 2
      // Predicated region
      $region25: #{tpu_custom_call.1} parent=5 // pred_check
        %p180 = pneg %p179
      $region26: #{tpu_custom_call.1} parent=5 // pred_check_branch
        %182 = sbr.rel (%p180) target = $region28
      $region27: #{tpu_custom_call.1} parent=5 // pred_region
        // Predicated region
        $region29: #{tpu_custom_call.1} parent=27 // pred_check
          %p183 = pneg %p34
        $region30: #{tpu_custom_call.1} parent=27 // pred_check_branch
          %185 = sbr.rel (%p183) target = $region32
        $region31: #{tpu_custom_call.1} parent=27 // pred_region
          %s186 = sand.u32 %s24, 1
          %s187 = sand.u32 %s24, 1
          %s188 = smul.addr %s187, 64
          %s189 = scalar_lea.vmem [#allocation2], %s188
          %s190 = smul.u32 4, %s14
          %s191 = smul.addr %s190, 8
          %s192 = scalar_lea.vmem %s0, %s191
          // Predicated region
          $region33: #{tpu_custom_call.1} parent=31 // pred_check
            _
          $region34: #{tpu_custom_call.1} parent=31 // pred_check_branch
            %194 = sbr.rel (0) target = $region36
          $region35: #{tpu_custom_call.1} parent=31 // pred_region
            // Predicated region
            $region37: #{tpu_custom_call.1} parent=35 // pred_check
              _
            $region38: #{tpu_custom_call.1} parent=35 // pred_check_branch
              %196 = sbr.rel (0) target = $region40
            $region39: #{tpu_custom_call.1} parent=35 // pred_region
              loop: start=0, step=1, limit=1
              $region41: #{tpu_custom_call.1} parent=39 // loop_pre_header
                _
              $region42: #{tpu_custom_call.1} parent=39 // loop_header
                %s198 = sphi 0, %s202
                %p199 = scmp.ge.s32.totalorder %s198, 1
                %s203 = sphi %s192, %s192
                %s204 = sphi %s189, %s189
              $region43: #{tpu_custom_call.1} parent=39 // loop_header_branch
                %201 = sbr.rel (%p199) target = $region47
              $region44: #{tpu_custom_call.1} parent=39 // loop_body
                %v205 = vld [vmem:[%s203] sm:$0xff]
                %206 = vst [vmem:[%s204] sm:$0xff] %v205
                %v207 = vld [vmem:[%s203 + $0x8] sm:$0xff]
                %208 = vst [vmem:[%s204 + $0x8] sm:$0xff] %v207
                %v209 = vld [vmem:[%s203 + $0x10] sm:$0xff]
                %210 = vst [vmem:[%s204 + $0x10] sm:$0xff] %v209
                %v211 = vld [vmem:[%s203 + $0x18] sm:$0xff]
                %212 = vst [vmem:[%s204 + $0x18] sm:$0xff] %v211
                %v213 = vld [vmem:[%s203 + $0x40] sm:$0xff]
                %214 = vst [vmem:[%s204 + $0x20] sm:$0xff] %v213
                %v215 = vld [vmem:[%s203 + $0x48] sm:$0xff]
                %216 = vst [vmem:[%s204 + $0x28] sm:$0xff] %v215
                %v217 = vld [vmem:[%s203 + $0x50] sm:$0xff]
                %218 = vst [vmem:[%s204 + $0x30] sm:$0xff] %v217
                %v219 = vld [vmem:[%s203 + $0x58] sm:$0xff]
                %220 = vst [vmem:[%s204 + $0x38] sm:$0xff] %v219
              $region45: #{tpu_custom_call.1} parent=39 // loop_footer
                %s202 = sadd.s32 1, %s198
              $region46: #{tpu_custom_call.1} parent=39 // loop_footer_branch
                %197 = sbr.rel target = $region42
              $region47: #{tpu_custom_call.1} parent=39 // loop_exit
                _
            $region40: #{tpu_custom_call.1} parent=35 // pred_fallthru
              _
            // Predicated region
            $region48: #{tpu_custom_call.1} parent=35 // pred_check
              _
            $region49: #{tpu_custom_call.1} parent=35 // pred_check_branch
              %222 = sbr.rel target = $region51
            $region50: #{tpu_custom_call.1} parent=35 // pred_region
              _
            $region51: #{tpu_custom_call.1} parent=35 // pred_fallthru
              _
          $region36: #{tpu_custom_call.1} parent=31 // pred_fallthru
            _
          %223 = vnop
        $region32: #{tpu_custom_call.1} parent=27 // pred_fallthru
          _
        // Predicated region
        $region52: #{tpu_custom_call.1} parent=27 // pred_check
          %p224 = pneg %p60
        $region53: #{tpu_custom_call.1} parent=27 // pred_check_branch
          %226 = sbr.rel (%p224) target = $region55
        $region54: #{tpu_custom_call.1} parent=27 // pred_region
          %s227 = sand.u32 %s50, 1
          %s228 = sand.u32 %s50, 1
          %s229 = smul.addr %s228, 64
          %s230 = scalar_lea.vmem [#allocation3], %s229
          %s231 = smul.u32 4, %s14
          %s232 = smul.addr %s231, 8
          %s233 = scalar_lea.vmem %s1, %s232
          // Predicated region
          $region56: #{tpu_custom_call.1} parent=54 // pred_check
            _
          $region57: #{tpu_custom_call.1} parent=54 // pred_check_branch
            %235 = sbr.rel (0) target = $region59
          $region58: #{tpu_custom_call.1} parent=54 // pred_region
            // Predicated region
            $region60: #{tpu_custom_call.1} parent=58 // pred_check
              _
            $region61: #{tpu_custom_call.1} parent=58 // pred_check_branch
              %237 = sbr.rel (0) target = $region63
            $region62: #{tpu_custom_call.1} parent=58 // pred_region
              loop: start=0, step=1, limit=1
              $region64: #{tpu_custom_call.1} parent=62 // loop_pre_header
                _
              $region65: #{tpu_custom_call.1} parent=62 // loop_header
                %s239 = sphi 0, %s243
                %p240 = scmp.ge.s32.totalorder %s239, 1
                %s244 = sphi %s233, %s233
                %s245 = sphi %s230, %s230
              $region66: #{tpu_custom_call.1} parent=62 // loop_header_branch
                %242 = sbr.rel (%p240) target = $region70
              $region67: #{tpu_custom_call.1} parent=62 // loop_body
                %v246 = vld [vmem:[%s244] sm:$0xff]
                %247 = vst [vmem:[%s245] sm:$0xff] %v246
                %v248 = vld [vmem:[%s244 + $0x8] sm:$0xff]
                %249 = vst [vmem:[%s245 + $0x8] sm:$0xff] %v248
                %v250 = vld [vmem:[%s244 + $0x10] sm:$0xff]
                %251 = vst [vmem:[%s245 + $0x10] sm:$0xff] %v250
                %v252 = vld [vmem:[%s244 + $0x18] sm:$0xff]
                %253 = vst [vmem:[%s245 + $0x18] sm:$0xff] %v252
                %v254 = vld [vmem:[%s244 + $0x40] sm:$0xff]
                %255 = vst [vmem:[%s245 + $0x20] sm:$0xff] %v254
                %v256 = vld [vmem:[%s244 + $0x48] sm:$0xff]
                %257 = vst [vmem:[%s245 + $0x28] sm:$0xff] %v256
                %v258 = vld [vmem:[%s244 + $0x50] sm:$0xff]
                %259 = vst [vmem:[%s245 + $0x30] sm:$0xff] %v258
                %v260 = vld [vmem:[%s244 + $0x58] sm:$0xff]
                %261 = vst [vmem:[%s245 + $0x38] sm:$0xff] %v260
              $region68: #{tpu_custom_call.1} parent=62 // loop_footer
                %s243 = sadd.s32 1, %s239
              $region69: #{tpu_custom_call.1} parent=62 // loop_footer_branch
                %238 = sbr.rel target = $region65
              $region70: #{tpu_custom_call.1} parent=62 // loop_exit
                _
            $region63: #{tpu_custom_call.1} parent=58 // pred_fallthru
              _
            // Predicated region
            $region71: #{tpu_custom_call.1} parent=58 // pred_check
              _
            $region72: #{tpu_custom_call.1} parent=58 // pred_check_branch
              %263 = sbr.rel target = $region74
            $region73: #{tpu_custom_call.1} parent=58 // pred_region
              _
            $region74: #{tpu_custom_call.1} parent=58 // pred_fallthru
              _
          $region59: #{tpu_custom_call.1} parent=54 // pred_fallthru
            _
          %264 = vnop
        $region55: #{tpu_custom_call.1} parent=27 // pred_fallthru
          _
      $region28: #{tpu_custom_call.1} parent=5 // pred_fallthru
        _
      %p265 = scmp.le.s32.totalorder 1, %s14
      %p266 = scmp.lt.s32.totalorder %s14, 3
      %p267 = pnand %p265, %p266
      %p268 = pneg %p267
      // Predicated region
      $region75: #{tpu_custom_call.1} parent=5 // pred_check
        _
      $region76: #{tpu_custom_call.1} parent=5 // pred_check_branch
        %270 = sbr.rel (%p267) target = $region78
      $region77: #{tpu_custom_call.1} parent=5 // pred_region
        %s271 = ssub.s32 %s14, 1
        %s272 = sand.u32 %s27, 1
        %s273 = sand.u32 %s27, 1
        %s274 = smul.addr %s273, 64
        %s275 = scalar_lea.vmem [#allocation2], %s274
        // Predicated region
        $region79: #{tpu_custom_call.1} parent=77 // pred_check
          %p276 = pneg %p40
        $region80: #{tpu_custom_call.1} parent=77 // pred_check_branch
          %278 = sbr.rel (%p276) target = $region82
        $region81: #{tpu_custom_call.1} parent=77 // pred_region
          _
        $region82: #{tpu_custom_call.1} parent=77 // pred_fallthru
          _
        %s279 = sand.u32 %s53, 1
        %s280 = sand.u32 %s53, 1
        %s281 = smul.addr %s280, 64
        %s282 = scalar_lea.vmem [#allocation3], %s281
        // Predicated region
        $region83: #{tpu_custom_call.1} parent=77 // pred_check
          %p283 = pneg %p66
        $region84: #{tpu_custom_call.1} parent=77 // pred_check_branch
          %285 = sbr.rel (%p283) target = $region86
        $region85: #{tpu_custom_call.1} parent=77 // pred_region
          _
        $region86: #{tpu_custom_call.1} parent=77 // pred_fallthru
          _
        %s286 = sand.u32 %s27, 1
        %s287 = sand.u32 %s27, 1
        %s288 = smul.addr %s287, 64
        %s289 = scalar_lea.vmem [#allocation2], %s288
        %p290 = pneg %p40
        %p291 = pneg %p37
        %s292 = sand.u32 %s53, 1
        %s293 = sand.u32 %s53, 1
        %s294 = smul.addr %s293, 64
        %s295 = scalar_lea.vmem [#allocation3], %s294
        %p296 = pneg %p66
        %p297 = pneg %p63
        %p298 = pneg %p87
        %p299 = pneg %p84
        %p300 = pneg %p108
        %p301 = pneg %p105
        %p302 = pneg %p129
        %p303 = pneg %p126
        %p304 = pneg %p155
        %p305 = pneg %p152
        %s306 = sand.u32 %s142, 1
        %s307 = scalar_lea.sflag [#allocation5], %s306
        %s308 = sand.u32 %s142, 1
        %s309 = smul.addr %s308, 64
        %s310 = scalar_lea.vmem [#allocation4], %s309
        %s311 = smul.u32 4, %s19
        %s312 = smul.u32 4, %s19
        %s313 = smul.u32 4, %s19
        %v314 = vld [vmem:[%s275] sm:$0xff]
        %v315 = vld [vmem:[%s275 + $0x8] sm:$0xff]
        %v316 = vld [vmem:[%s275 + $0x10] sm:$0xff]
        %v317 = vld [vmem:[%s275 + $0x18] sm:$0xff]
        %v318 = vld [vmem:[%s275 + $0x20] sm:$0x1]
        %v319 = vld [vmem:[%s275 + $0x28] sm:$0x1]
        %v320 = vld [vmem:[%s275 + $0x30] sm:$0x1]
        %v321 = vld [vmem:[%s275 + $0x38] sm:$0x1]
        %v322 = vld [vmem:[%s282] sm:$0xff]
        %v323 = vld [vmem:[%s282 + $0x8] sm:$0xff]
        %v324 = vld [vmem:[%s282 + $0x10] sm:$0xff]
        %v325 = vld [vmem:[%s282 + $0x18] sm:$0xff]
        %v326 = vld [vmem:[%s282 + $0x20] sm:$0x1]
        %v327 = vld [vmem:[%s282 + $0x28] sm:$0x1]
        %v328 = vld [vmem:[%s282 + $0x30] sm:$0x1]
        %v329 = vld [vmem:[%s282 + $0x38] sm:$0x1]
        %v330 = vld [vmem:[%s2] sm:$0xff]
        %v331 = vld [vmem:[%s2 + $0x8] sm:$0xff]
        %v332 = vld [vmem:[%s2 + $0x10] sm:$0xff]
        %v333 = vld [vmem:[%s2 + $0x18] sm:$0x3f]
        %vm334 = vcmask 72704
        %v336 = vsel %vm334, %v330, 0
        %v339 = vsel %vm334, %v331, 0
        %v342 = vsel %vm334, %v332, 0
        %v345 = vsel %vm334, %v333, 0
        %vm347 = vcmask 1040384
        %v349 = vsel %vm347, %v318, 0
        %v352 = vsel %vm347, %v319, 0
        %v355 = vsel %vm347, %v320, 0
        %v358 = vsel %vm347, %v321, 0
        %360 = vmatprep.subr.mxu0 %v315
        %361 = vmatpush1.msra.mxu0 %v314
        %362 = vmatprep.subr.mxu0 %v352
        %363 = vmatpush1.msra.mxu0 %v349
        %364 = vmatprep.subr.mxu0 0.0
        %365 = vmatpush1.msra.mxu0 0.0
        %366 = vmatprep.subr.mxu0 0.0
        %367 = vmatpush1.msra.mxu0 0.0
        %368 = vmatprep.subr.mxu0 0.0
        %369 = vmatpush1.msra.mxu0 0.0
        %370 = vmatprep.subr.mxu0 0.0
        %371 = vmatpush1.msra.mxu0 0.0
        %372 = vmatprep.subr.mxu0 0.0
        %373 = vmatpush1.msra.mxu0 0.0
        %374 = vmatprep.subr.mxu0 0.0
        %375 = vmatpush1.msra.mxu0 0.0
        %376 = vmatprep.subr.mxu0 0.0
        %377 = vmatpush1.msra.mxu0 0.0
        %378 = vmatprep.subr.mxu0 0.0
        %379 = vmatpush1.msra.mxu0 0.0
        %380 = vmatprep.subr.mxu0 0.0
        %381 = vmatpush1.msra.mxu0 0.0
        %382 = vmatprep.subr.mxu0 0.0
        %383 = vmatpush1.msra.mxu0 0.0
        %384 = vmatprep.subr.mxu0 0.0
        %385 = vmatpush1.msra.mxu0 0.0
        %386 = vmatprep.subr.mxu0 0.0
        %387 = vmatpush1.msra.mxu0 0.0
        %388 = vmatprep.subr.mxu0 0.0
        %389 = vmatpush1.msra.mxu0 0.0
        %390 = vmatprep.subr.mxu0 0.0
        %391 = vmatpush1.msra.mxu0 0.0
        %392 = vmatprep.subr.mxu0 0.0
        %393 = vmatpush1.msra.mxu0 0.0
        %394 = vmatprep.subr.mxu0 0.0
        %395 = vmatpush1.msra.mxu0 0.0
        %396 = vmatprep.subr.mxu0 0.0
        %397 = vmatpush1.msra.mxu0 0.0
        %398 = vmatprep.subr.mxu0 0.0
        %399 = vmatpush1.msra.mxu0 0.0
        %400 = vmatprep.subr.mxu0 0.0
        %401 = vmatpush1.msra.mxu0 0.0
        %402 = vmatprep.subr.mxu0 0.0
        %403 = vmatpush1.msra.mxu0 0.0
        %404 = vmatprep.subr.mxu0 0.0
        %405 = vmatpush1.msra.mxu0 0.0
        %406 = vmatprep.subr.mxu0 0.0
        %407 = vmatpush1.msra.mxu0 0.0
        %408 = vmatprep.subr.mxu0 0.0
        %409 = vmatpush1.msra.mxu0 0.0
        %410 = vmatprep.subr.mxu0 0.0
        %411 = vmatpush1.msra.mxu0 0.0
        %412 = vmatprep.subr.mxu0 0.0
        %413 = vmatpush1.msra.mxu0 0.0
        %414 = vmatprep.subr.mxu0 0.0
        %415 = vmatpush1.msra.mxu0 0.0
        %416 = vmatprep.subr.mxu0 0.0
        %417 = vmatpush1.msra.mxu0 0.0
        %418 = vmatprep.subr.mxu0 0.0
        %419 = vmatpush1.msra.mxu0 0.0
        %420 = vmatprep.subr.mxu0 0.0
        %421 = vmatpush1.msra.mxu0 0.0
        %422 = vmatprep.subr.mxu0 0.0
        %423 = vmatpush1.msra.mxu0 0.0
        %424 = vmatprep.mubr.f32.mxu0 0.0
        %425 = vmatmul.mubr.f32.gmra.mrb[0].mxu0 %v336
        %v426 = vpop.f32.mrb[0].mxu0
        %v427 = vadd.f32 0.0, %v426
        %v428 = vpop.f32.mrb[0].mxu0
        %v429 = vadd.f32 0.0, %v428
        %430 = vmatprep.mubr.f32.mxu0 0.0
        %431 = vmatmul.mubr.f32.gmra.mrb[0].mxu0 %v339
        %v432 = vpop.f32.mrb[0].mxu0
        %v433 = vadd.f32 0.0, %v432
        %v434 = vpop.f32.mrb[0].mxu0
        %v435 = vadd.f32 0.0, %v434
        %436 = vmatprep.mubr.f32.mxu0 0.0
        %437 = vmatmul.mubr.f32.gmra.mrb[0].mxu0 %v342
        %v438 = vpop.f32.mrb[0].mxu0
        %v439 = vadd.f32 0.0, %v438
        %v440 = vpop.f32.mrb[0].mxu0
        %v441 = vadd.f32 0.0, %v440
        %442 = vmatprep.mubr.f32.mxu0 0.0
        %443 = vmatmul.mubr.f32.gmra.mrb[0].mxu0 %v345
        %v444 = vpop.f32.mrb[0].mxu0
        %v445 = vadd.f32 0.0, %v444
        %v446 = vpop.f32.mrb[0].mxu0
        %v447 = vadd.f32 0.0, %v446
        %448 = vdwg.mxu0
        %449 = vmatprep.subr.mxu0 %v317
        %450 = vmatpush1.msra.mxu0 %v316
        %451 = vmatprep.subr.mxu0 %v358
        %452 = vmatpush1.msra.mxu0 %v355
        %453 = vmatprep.subr.mxu0 0.0
        %454 = vmatpush1.msra.mxu0 0.0
        %455 = vmatprep.subr.mxu0 0.0
        %456 = vmatpush1.msra.mxu0 0.0
        %457 = vmatprep.subr.mxu0 0.0
        %458 = vmatpush1.msra.mxu0 0.0
        %459 = vmatprep.subr.mxu0 0.0
        %460 = vmatpush1.msra.mxu0 0.0
        %461 = vmatprep.subr.mxu0 0.0
        %462 = vmatpush1.msra.mxu0 0.0
        %463 = vmatprep.subr.mxu0 0.0
        %464 = vmatpush1.msra.mxu0 0.0
        %465 = vmatprep.subr.mxu0 0.0
        %466 = vmatpush1.msra.mxu0 0.0
        %467 = vmatprep.subr.mxu0 0.0
        %468 = vmatpush1.msra.mxu0 0.0
        %469 = vmatprep.subr.mxu0 0.0
        %470 = vmatpush1.msra.mxu0 0.0
        %471 = vmatprep.subr.mxu0 0.0
        %472 = vmatpush1.msra.mxu0 0.0
        %473 = vmatprep.subr.mxu0 0.0
        %474 = vmatpush1.msra.mxu0 0.0
        %475 = vmatprep.subr.mxu0 0.0
        %476 = vmatpush1.msra.mxu0 0.0
        %477 = vmatprep.subr.mxu0 0.0
        %478 = vmatpush1.msra.mxu0 0.0
        %479 = vmatprep.subr.mxu0 0.0
        %480 = vmatpush1.msra.mxu0 0.0
        %481 = vmatprep.subr.mxu0 0.0
        %482 = vmatpush1.msra.mxu0 0.0
        %483 = vmatprep.subr.mxu0 0.0
        %484 = vmatpush1.msra.mxu0 0.0
        %485 = vmatprep.subr.mxu0 0.0
        %486 = vmatpush1.msra.mxu0 0.0
        %487 = vmatprep.subr.mxu0 0.0
        %488 = vmatpush1.msra.mxu0 0.0
        %489 = vmatprep.subr.mxu0 0.0
        %490 = vmatpush1.msra.mxu0 0.0
        %491 = vmatprep.subr.mxu0 0.0
        %492 = vmatpush1.msra.mxu0 0.0
        %493 = vmatprep.subr.mxu0 0.0
        %494 = vmatpush1.msra.mxu0 0.0
        %495 = vmatprep.subr.mxu0 0.0
        %496 = vmatpush1.msra.mxu0 0.0
        %497 = vmatprep.subr.mxu0 0.0
        %498 = vmatpush1.msra.mxu0 0.0
        %499 = vmatprep.subr.mxu0 0.0
        %500 = vmatpush1.msra.mxu0 0.0
        %501 = vmatprep.subr.mxu0 0.0
        %502 = vmatpush1.msra.mxu0 0.0
        %503 = vmatprep.subr.mxu0 0.0
        %504 = vmatpush1.msra.mxu0 0.0
        %505 = vmatprep.subr.mxu0 0.0
        %506 = vmatpush1.msra.mxu0 0.0
        %507 = vmatprep.subr.mxu0 0.0
        %508 = vmatpush1.msra.mxu0 0.0
        %509 = vmatprep.subr.mxu0 0.0
        %510 = vmatpush1.msra.mxu0 0.0
        %511 = vmatprep.subr.mxu0 0.0
        %512 = vmatpush1.msra.mxu0 0.0
        %513 = vmatprep.mubr.f32.mxu0 0.0
        %514 = vmatmul.mubr.f32.gmra.mrb[0].mxu0 %v336
        %v515 = vpop.f32.mrb[0].mxu0
        %v516 = vadd.f32 0.0, %v515
        %v517 = vpop.f32.mrb[0].mxu0
        %v518 = vadd.f32 0.0, %v517
        %519 = vmatprep.mubr.f32.mxu0 0.0
        %520 = vmatmul.mubr.f32.gmra.mrb[0].mxu0 %v339
        %v521 = vpop.f32.mrb[0].mxu0
        %v522 = vadd.f32 0.0, %v521
        %v523 = vpop.f32.mrb[0].mxu0
        %v524 = vadd.f32 0.0, %v523
        %525 = vmatprep.mubr.f32.mxu0 0.0
        %526 = vmatmul.mubr.f32.gmra.mrb[0].mxu0 %v342
        %v527 = vpop.f32.mrb[0].mxu0
        %v528 = vadd.f32 0.0, %v527
        %v529 = vpop.f32.mrb[0].mxu0
        %v530 = vadd.f32 0.0, %v529
        %531 = vmatprep.mubr.f32.mxu0 0.0
        %532 = vmatmul.mubr.f32.gmra.mrb[0].mxu0 %v345
        %v533 = vpop.f32.mrb[0].mxu0
        %v534 = vadd.f32 0.0, %v533
        %v535 = vpop.f32.mrb[0].mxu0
        %v536 = vadd.f32 0.0, %v535
        %537 = vdwg.mxu0
        %s538 = scalar_lea.vmem %s2, 32
        %v539 = vld [vmem:[%s538] sm:$0xff]
        %v540 = vld [vmem:[%s538 + $0x8] sm:$0xff]
        %v541 = vld [vmem:[%s538 + $0x10] sm:$0xff]
        %v542 = vld [vmem:[%s538 + $0x18] sm:$0x3f]
        %v544 = vsel %vm334, %v539, 0
        %v547 = vsel %vm334, %v540, 0
        %v550 = vsel %vm334, %v541, 0
        %v553 = vsel %vm334, %v542, 0
        %555 = vmatprep.subr.mxu0 %v315
        %556 = vmatpush1.msra.mxu0 %v314
        %557 = vmatprep.subr.mxu0 %v352
        %558 = vmatpush1.msra.mxu0 %v349
        %559 = vmatprep.subr.mxu0 0.0
        %560 = vmatpush1.msra.mxu0 0.0
        %561 = vmatprep.subr.mxu0 0.0
        %562 = vmatpush1.msra.mxu0 0.0
        %563 = vmatprep.subr.mxu0 0.0
        %564 = vmatpush1.msra.mxu0 0.0
        %565 = vmatprep.subr.mxu0 0.0
        %566 = vmatpush1.msra.mxu0 0.0
        %567 = vmatprep.subr.mxu0 0.0
        %568 = vmatpush1.msra.mxu0 0.0
        %569 = vmatprep.subr.mxu0 0.0
        %570 = vmatpush1.msra.mxu0 0.0
        %571 = vmatprep.subr.mxu0 0.0
        %572 = vmatpush1.msra.mxu0 0.0
        %573 = vmatprep.subr.mxu0 0.0
        %574 = vmatpush1.msra.mxu0 0.0
        %575 = vmatprep.subr.mxu0 0.0
        %576 = vmatpush1.msra.mxu0 0.0
        %577 = vmatprep.subr.mxu0 0.0
        %578 = vmatpush1.msra.mxu0 0.0
        %579 = vmatprep.subr.mxu0 0.0
        %580 = vmatpush1.msra.mxu0 0.0
        %581 = vmatprep.subr.mxu0 0.0
        %582 = vmatpush1.msra.mxu0 0.0
        %583 = vmatprep.subr.mxu0 0.0
        %584 = vmatpush1.msra.mxu0 0.0
        %585 = vmatprep.subr.mxu0 0.0
        %586 = vmatpush1.msra.mxu0 0.0
        %587 = vmatprep.subr.mxu0 0.0
        %588 = vmatpush1.msra.mxu0 0.0
        %589 = vmatprep.subr.mxu0 0.0
        %590 = vmatpush1.msra.mxu0 0.0
        %591 = vmatprep.subr.mxu0 0.0
        %592 = vmatpush1.msra.mxu0 0.0
        %593 = vmatprep.subr.mxu0 0.0
        %594 = vmatpush1.msra.mxu0 0.0
        %595 = vmatprep.subr.mxu0 0.0
        %596 = vmatpush1.msra.mxu0 0.0
        %597 = vmatprep.subr.mxu0 0.0
        %598 = vmatpush1.msra.mxu0 0.0
        %599 = vmatprep.subr.mxu0 0.0
        %600 = vmatpush1.msra.mxu0 0.0
        %601 = vmatprep.subr.mxu0 0.0
        %602 = vmatpush1.msra.mxu0 0.0
        %603 = vmatprep.subr.mxu0 0.0
        %604 = vmatpush1.msra.mxu0 0.0
        %605 = vmatprep.subr.mxu0 0.0
        %606 = vmatpush1.msra.mxu0 0.0
        %607 = vmatprep.subr.mxu0 0.0
        %608 = vmatpush1.msra.mxu0 0.0
        %609 = vmatprep.subr.mxu0 0.0
        %610 = vmatpush1.msra.mxu0 0.0
        %611 = vmatprep.subr.mxu0 0.0
        %612 = vmatpush1.msra.mxu0 0.0
        %613 = vmatprep.subr.mxu0 0.0
        %614 = vmatpush1.msra.mxu0 0.0
        %615 = vmatprep.subr.mxu0 0.0
        %616 = vmatpush1.msra.mxu0 0.0
        %617 = vmatprep.subr.mxu0 0.0
        %618 = vmatpush1.msra.mxu0 0.0
        %619 = vmatprep.mubr.f32.mxu0 0.0
        %620 = vmatmul.mubr.f32.gmra.mrb[0].mxu0 %v544
        %v621 = vpop.f32.mrb[0].mxu0
        %v622 = vadd.f32 0.0, %v621
        %v623 = vpop.f32.mrb[0].mxu0
        %v624 = vadd.f32 0.0, %v623
        %625 = vmatprep.mubr.f32.mxu0 0.0
        %626 = vmatmul.mubr.f32.gmra.mrb[0].mxu0 %v547
        %v627 = vpop.f32.mrb[0].mxu0
        %v628 = vadd.f32 0.0, %v627
        %v629 = vpop.f32.mrb[0].mxu0
        %v630 = vadd.f32 0.0, %v629
        %631 = vmatprep.mubr.f32.mxu0 0.0
        %632 = vmatmul.mubr.f32.gmra.mrb[0].mxu0 %v550
        %v633 = vpop.f32.mrb[0].mxu0
        %v634 = vadd.f32 0.0, %v633
        %v635 = vpop.f32.mrb[0].mxu0
        %v636 = vadd.f32 0.0, %v635
        %637 = vmatprep.mubr.f32.mxu0 0.0
        %638 = vmatmul.mubr.f32.gmra.mrb[0].mxu0 %v553
        %v639 = vpop.f32.mrb[0].mxu0
        %v640 = vadd.f32 0.0, %v639
        %v641 = vpop.f32.mrb[0].mxu0
        %v642 = vadd.f32 0.0, %v641
        %643 = vdwg.mxu0
        %644 = vmatprep.subr.mxu0 %v317
        %645 = vmatpush1.msra.mxu0 %v316
        %646 = vmatprep.subr.mxu0 %v358
        %647 = vmatpush1.msra.mxu0 %v355
        %648 = vmatprep.subr.mxu0 0.0
        %649 = vmatpush1.msra.mxu0 0.0
        %650 = vmatprep.subr.mxu0 0.0
        %651 = vmatpush1.msra.mxu0 0.0
        %652 = vmatprep.subr.mxu0 0.0
        %653 = vmatpush1.msra.mxu0 0.0
        %654 = vmatprep.subr.mxu0 0.0
        %655 = vmatpush1.msra.mxu0 0.0
        %656 = vmatprep.subr.mxu0 0.0
        %657 = vmatpush1.msra.mxu0 0.0
        %658 = vmatprep.subr.mxu0 0.0
        %659 = vmatpush1.msra.mxu0 0.0
        %660 = vmatprep.subr.mxu0 0.0
        %661 = vmatpush1.msra.mxu0 0.0
        %662 = vmatprep.subr.mxu0 0.0
        %663 = vmatpush1.msra.mxu0 0.0
        %664 = vmatprep.subr.mxu0 0.0
        %665 = vmatpush1.msra.mxu0 0.0
        %666 = vmatprep.subr.mxu0 0.0
        %667 = vmatpush1.msra.mxu0 0.0
        %668 = vmatprep.subr.mxu0 0.0
        %669 = vmatpush1.msra.mxu0 0.0
        %670 = vmatprep.subr.mxu0 0.0
        %671 = vmatpush1.msra.mxu0 0.0
        %672 = vmatprep.subr.mxu0 0.0
        %673 = vmatpush1.msra.mxu0 0.0
        %674 = vmatprep.subr.mxu0 0.0
        %675 = vmatpush1.msra.mxu0 0.0
        %676 = vmatprep.subr.mxu0 0.0
        %677 = vmatpush1.msra.mxu0 0.0
        %678 = vmatprep.subr.mxu0 0.0
        %679 = vmatpush1.msra.mxu0 0.0
        %680 = vmatprep.subr.mxu0 0.0
        %681 = vmatpush1.msra.mxu0 0.0
        %682 = vmatprep.subr.mxu0 0.0
        %683 = vmatpush1.msra.mxu0 0.0
        %684 = vmatprep.subr.mxu0 0.0
        %685 = vmatpush1.msra.mxu0 0.0
        %686 = vmatprep.subr.mxu0 0.0
        %687 = vmatpush1.msra.mxu0 0.0
        %688 = vmatprep.subr.mxu0 0.0
        %689 = vmatpush1.msra.mxu0 0.0
        %690 = vmatprep.subr.mxu0 0.0
        %691 = vmatpush1.msra.mxu0 0.0
        %692 = vmatprep.subr.mxu0 0.0
        %693 = vmatpush1.msra.mxu0 0.0
        %694 = vmatprep.subr.mxu0 0.0
        %695 = vmatpush1.msra.mxu0 0.0
        %696 = vmatprep.subr.mxu0 0.0
        %697 = vmatpush1.msra.mxu0 0.0
        %698 = vmatprep.subr.mxu0 0.0
        %699 = vmatpush1.msra.mxu0 0.0
        %700 = vmatprep.subr.mxu0 0.0
        %701 = vmatpush1.msra.mxu0 0.0
        %702 = vmatprep.subr.mxu0 0.0
        %703 = vmatpush1.msra.mxu0 0.0
        %704 = vmatprep.subr.mxu0 0.0
        %705 = vmatpush1.msra.mxu0 0.0
        %706 = vmatprep.subr.mxu0 0.0
        %707 = vmatpush1.msra.mxu0 0.0
        %708 = vmatprep.mubr.f32.mxu0 0.0
        %709 = vmatmul.mubr.f32.gmra.mrb[0].mxu0 %v544
        %v710 = vpop.f32.mrb[0].mxu0
        %v711 = vadd.f32 0.0, %v710
        %v712 = vpop.f32.mrb[0].mxu0
        %v713 = vadd.f32 0.0, %v712
        %714 = vmatprep.mubr.f32.mxu0 0.0
        %715 = vmatmul.mubr.f32.gmra.mrb[0].mxu0 %v547
        %v716 = vpop.f32.mrb[0].mxu0
        %v717 = vadd.f32 0.0, %v716
        %v718 = vpop.f32.mrb[0].mxu0
        %v719 = vadd.f32 0.0, %v718
        %720 = vmatprep.mubr.f32.mxu0 0.0
        %721 = vmatmul.mubr.f32.gmra.mrb[0].mxu0 %v550
        %v722 = vpop.f32.mrb[0].mxu0
        %v723 = vadd.f32 0.0, %v722
        %v724 = vpop.f32.mrb[0].mxu0
        %v725 = vadd.f32 0.0, %v724
        %726 = vmatprep.mubr.f32.mxu0 0.0
        %727 = vmatmul.mubr.f32.gmra.mrb[0].mxu0 %v553
        %v728 = vpop.f32.mrb[0].mxu0
        %v729 = vadd.f32 0.0, %v728
        %v730 = vpop.f32.mrb[0].mxu0
        %v731 = vadd.f32 0.0, %v730
        %732 = vdwg.mxu0
        %s733 = scalar_lea.vmem %s2, 64
        %v734 = vld [vmem:[%s733] sm:$0xff]
        %v735 = vld [vmem:[%s733 + $0x8] sm:$0xff]
        %v736 = vld [vmem:[%s733 + $0x10] sm:$0xff]
        %v737 = vld [vmem:[%s733 + $0x18] sm:$0x3f]
        %v739 = vsel %vm334, %v734, 0
        %v742 = vsel %vm334, %v735, 0
        %v745 = vsel %vm334, %v736, 0
        %v748 = vsel %vm334, %v737, 0
        %750 = vmatprep.subr.mxu0 %v315
        %751 = vmatpush1.msra.mxu0 %v314
        %752 = vmatprep.subr.mxu0 %v352
        %753 = vmatpush1.msra.mxu0 %v349
        %754 = vmatprep.subr.mxu0 0.0
        %755 = vmatpush1.msra.mxu0 0.0
        %756 = vmatprep.subr.mxu0 0.0
        %757 = vmatpush1.msra.mxu0 0.0
        %758 = vmatprep.subr.mxu0 0.0
        %759 = vmatpush1.msra.mxu0 0.0
        %760 = vmatprep.subr.mxu0 0.0
        %761 = vmatpush1.msra.mxu0 0.0
        %762 = vmatprep.subr.mxu0 0.0
        %763 = vmatpush1.msra.mxu0 0.0
        %764 = vmatprep.subr.mxu0 0.0
        %765 = vmatpush1.msra.mxu0 0.0
        %766 = vmatprep.subr.mxu0 0.0
        %767 = vmatpush1.msra.mxu0 0.0
        %768 = vmatprep.subr.mxu0 0.0
        %769 = vmatpush1.msra.mxu0 0.0
        %770 = vmatprep.subr.mxu0 0.0
        %771 = vmatpush1.msra.mxu0 0.0
        %772 = vmatprep.subr.mxu0 0.0
        %773 = vmatpush1.msra.mxu0 0.0
        %774 = vmatprep.subr.mxu0 0.0
        %775 = vmatpush1.msra.mxu0 0.0
        %776 = vmatprep.subr.mxu0 0.0
        %777 = vmatpush1.msra.mxu0 0.0
        %778 = vmatprep.subr.mxu0 0.0
        %779 = vmatpush1.msra.mxu0 0.0
        %780 = vmatprep.subr.mxu0 0.0
        %781 = vmatpush1.msra.mxu0 0.0
        %782 = vmatprep.subr.mxu0 0.0
        %783 = vmatpush1.msra.mxu0 0.0
        %784 = vmatprep.subr.mxu0 0.0
        %785 = vmatpush1.msra.mxu0 0.0
        %786 = vmatprep.subr.mxu0 0.0
        %787 = vmatpush1.msra.mxu0 0.0
        %788 = vmatprep.subr.mxu0 0.0
        %789 = vmatpush1.msra.mxu0 0.0
        %790 = vmatprep.subr.mxu0 0.0
        %791 = vmatpush1.msra.mxu0 0.0
        %792 = vmatprep.subr.mxu0 0.0
        %793 = vmatpush1.msra.mxu0 0.0
        %794 = vmatprep.subr.mxu0 0.0
        %795 = vmatpush1.msra.mxu0 0.0
        %796 = vmatprep.subr.mxu0 0.0
        %797 = vmatpush1.msra.mxu0 0.0
        %798 = vmatprep.subr.mxu0 0.0
        %799 = vmatpush1.msra.mxu0 0.0
        %800 = vmatprep.subr.mxu0 0.0
        %801 = vmatpush1.msra.mxu0 0.0
        %802 = vmatprep.subr.mxu0 0.0
        %803 = vmatpush1.msra.mxu0 0.0
        %804 = vmatprep.subr.mxu0 0.0
        %805 = vmatpush1.msra.mxu0 0.0
        %806 = vmatprep.subr.mxu0 0.0
        %807 = vmatpush1.msra.mxu0 0.0
        %808 = vmatprep.subr.mxu0 0.0
        %809 = vmatpush1.msra.mxu0 0.0
        %810 = vmatprep.subr.mxu0 0.0
        %811 = vmatpush1.msra.mxu0 0.0
        %812 = vmatprep.subr.mxu0 0.0
        %813 = vmatpush1.msra.mxu0 0.0
        %814 = vmatprep.mubr.f32.mxu0 0.0
        %815 = vmatmul.mubr.f32.gmra.mrb[0].mxu0 %v739
        %v816 = vpop.f32.mrb[0].mxu0
        %v817 = vadd.f32 0.0, %v816
        %v818 = vpop.f32.mrb[0].mxu0
        %v819 = vadd.f32 0.0, %v818
        %820 = vmatprep.mubr.f32.mxu0 0.0
        %821 = vmatmul.mubr.f32.gmra.mrb[0].mxu0 %v742
        %v822 = vpop.f32.mrb[0].mxu0
        %v823 = vadd.f32 0.0, %v822
        %v824 = vpop.f32.mrb[0].mxu0
        %v825 = vadd.f32 0.0, %v824
        %826 = vmatprep.mubr.f32.mxu0 0.0
        %827 = vmatmul.mubr.f32.gmra.mrb[0].mxu0 %v745
        %v828 = vpop.f32.mrb[0].mxu0
        %v829 = vadd.f32 0.0, %v828
        %v830 = vpop.f32.mrb[0].mxu0
        %v831 = vadd.f32 0.0, %v830
        %832 = vmatprep.mubr.f32.mxu0 0.0
        %833 = vmatmul.mubr.f32.gmra.mrb[0].mxu0 %v748
        %v834 = vpop.f32.mrb[0].mxu0
        %v835 = vadd.f32 0.0, %v834
        %v836 = vpop.f32.mrb[0].mxu0
        %v837 = vadd.f32 0.0, %v836
        %838 = vdwg.mxu0
        %839 = vmatprep.subr.mxu0 %v317
        %840 = vmatpush1.msra.mxu0 %v316
        %841 = vmatprep.subr.mxu0 %v358
        %842 = vmatpush1.msra.mxu0 %v355
        %843 = vmatprep.subr.mxu0 0.0
        %844 = vmatpush1.msra.mxu0 0.0
        %845 = vmatprep.subr.mxu0 0.0
        %846 = vmatpush1.msra.mxu0 0.0
        %847 = vmatprep.subr.mxu0 0.0
        %848 = vmatpush1.msra.mxu0 0.0
        %849 = vmatprep.subr.mxu0 0.0
        %850 = vmatpush1.msra.mxu0 0.0
        %851 = vmatprep.subr.mxu0 0.0
        %852 = vmatpush1.msra.mxu0 0.0
        %853 = vmatprep.subr.mxu0 0.0
        %854 = vmatpush1.msra.mxu0 0.0
        %855 = vmatprep.subr.mxu0 0.0
        %856 = vmatpush1.msra.mxu0 0.0
        %857 = vmatprep.subr.mxu0 0.0
        %858 = vmatpush1.msra.mxu0 0.0
        %859 = vmatprep.subr.mxu0 0.0
        %860 = vmatpush1.msra.mxu0 0.0
        %861 = vmatprep.subr.mxu0 0.0
        %862 = vmatpush1.msra.mxu0 0.0
        %863 = vmatprep.subr.mxu0 0.0
        %864 = vmatpush1.msra.mxu0 0.0
        %865 = vmatprep.subr.mxu0 0.0
        %866 = vmatpush1.msra.mxu0 0.0
        %867 = vmatprep.subr.mxu0 0.0
        %868 = vmatpush1.msra.mxu0 0.0
        %869 = vmatprep.subr.mxu0 0.0
        %870 = vmatpush1.msra.mxu0 0.0
        %871 = vmatprep.subr.mxu0 0.0
        %872 = vmatpush1.msra.mxu0 0.0
        %873 = vmatprep.subr.mxu0 0.0
        %874 = vmatpush1.msra.mxu0 0.0
        %875 = vmatprep.subr.mxu0 0.0
        %876 = vmatpush1.msra.mxu0 0.0
        %877 = vmatprep.subr.mxu0 0.0
        %878 = vmatpush1.msra.mxu0 0.0
        %879 = vmatprep.subr.mxu0 0.0
        %880 = vmatpush1.msra.mxu0 0.0
        %881 = vmatprep.subr.mxu0 0.0
        %882 = vmatpush1.msra.mxu0 0.0
        %883 = vmatprep.subr.mxu0 0.0
        %884 = vmatpush1.msra.mxu0 0.0
        %885 = vmatprep.subr.mxu0 0.0
        %886 = vmatpush1.msra.mxu0 0.0
        %887 = vmatprep.subr.mxu0 0.0
        %888 = vmatpush1.msra.mxu0 0.0
        %889 = vmatprep.subr.mxu0 0.0
        %890 = vmatpush1.msra.mxu0 0.0
        %891 = vmatprep.subr.mxu0 0.0
        %892 = vmatpush1.msra.mxu0 0.0
        %893 = vmatprep.subr.mxu0 0.0
        %894 = vmatpush1.msra.mxu0 0.0
        %895 = vmatprep.subr.mxu0 0.0
        %896 = vmatpush1.msra.mxu0 0.0
        %897 = vmatprep.subr.mxu0 0.0
        %898 = vmatpush1.msra.mxu0 0.0
        %899 = vmatprep.subr.mxu0 0.0
        %900 = vmatpush1.msra.mxu0 0.0
        %901 = vmatprep.subr.mxu0 0.0
        %902 = vmatpush1.msra.mxu0 0.0
        %903 = vmatprep.mubr.f32.mxu0 0.0
        %904 = vmatmul.mubr.f32.gmra.mrb[0].mxu0 %v739
        %v905 = vpop.f32.mrb[0].mxu0
        %v906 = vadd.f32 0.0, %v905
        %v907 = vpop.f32.mrb[0].mxu0
        %v908 = vadd.f32 0.0, %v907
        %909 = vmatprep.mubr.f32.mxu0 0.0
        %910 = vmatmul.mubr.f32.gmra.mrb[0].mxu0 %v742
        %v911 = vpop.f32.mrb[0].mxu0
        %v912 = vadd.f32 0.0, %v911
        %v913 = vpop.f32.mrb[0].mxu0
        %v914 = vadd.f32 0.0, %v913
        %915 = vmatprep.mubr.f32.mxu0 0.0
        %916 = vmatmul.mubr.f32.gmra.mrb[0].mxu0 %v745
        %v917 = vpop.f32.mrb[0].mxu0
        %v918 = vadd.f32 0.0, %v917
        %v919 = vpop.f32.mrb[0].mxu0
        %v920 = vadd.f32 0.0, %v919
        %921 = vmatprep.mubr.f32.mxu0 0.0
        %922 = vmatmul.mubr.f32.gmra.mrb[0].mxu0 %v748
        %v923 = vpop.f32.mrb[0].mxu0
        %v924 = vadd.f32 0.0, %v923
        %v925 = vpop.f32.mrb[0].mxu0
        %v926 = vadd.f32 0.0, %v925
        %927 = vdwg.mxu0
        %s928 = scalar_lea.vmem %s2, 96
        %v929 = vld [vmem:[%s928] sm:$0xff]
        %v930 = vld [vmem:[%s928 + $0x8] sm:$0xff]
        %v931 = vld [vmem:[%s928 + $0x10] sm:$0xff]
        %v932 = vld [vmem:[%s928 + $0x18] sm:$0x3f]
        %v934 = vsel %vm334, %v929, 0
        %v937 = vsel %vm334, %v930, 0
        %v940 = vsel %vm334, %v931, 0
        %v943 = vsel %vm334, %v932, 0
        %945 = vmatprep.subr.mxu0 %v315
        %946 = vmatpush1.msra.mxu0 %v314
        %947 = vmatprep.subr.mxu0 %v352
        %948 = vmatpush1.msra.mxu0 %v349
        %949 = vmatprep.subr.mxu0 0.0
        %950 = vmatpush1.msra.mxu0 0.0
        %951 = vmatprep.subr.mxu0 0.0
        %952 = vmatpush1.msra.mxu0 0.0
        %953 = vmatprep.subr.mxu0 0.0
        %954 = vmatpush1.msra.mxu0 0.0
        %955 = vmatprep.subr.mxu0 0.0
        %956 = vmatpush1.msra.mxu0 0.0
        %957 = vmatprep.subr.mxu0 0.0
        %958 = vmatpush1.msra.mxu0 0.0
        %959 = vmatprep.subr.mxu0 0.0
        %960 = vmatpush1.msra.mxu0 0.0
        %961 = vmatprep.subr.mxu0 0.0
        %962 = vmatpush1.msra.mxu0 0.0
        %963 = vmatprep.subr.mxu0 0.0
        %964 = vmatpush1.msra.mxu0 0.0
        %965 = vmatprep.subr.mxu0 0.0
        %966 = vmatpush1.msra.mxu0 0.0
        %967 = vmatprep.subr.mxu0 0.0
        %968 = vmatpush1.msra.mxu0 0.0
        %969 = vmatprep.subr.mxu0 0.0
        %970 = vmatpush1.msra.mxu0 0.0
        %971 = vmatprep.subr.mxu0 0.0
        %972 = vmatpush1.msra.mxu0 0.0
        %973 = vmatprep.subr.mxu0 0.0
        %974 = vmatpush1.msra.mxu0 0.0
        %975 = vmatprep.subr.mxu0 0.0
        %976 = vmatpush1.msra.mxu0 0.0
        %977 = vmatprep.subr.mxu0 0.0
        %978 = vmatpush1.msra.mxu0 0.0
        %979 = vmatprep.subr.mxu0 0.0
        %980 = vmatpush1.msra.mxu0 0.0
        %981 = vmatprep.subr.mxu0 0.0
        %982 = vmatpush1.msra.mxu0 0.0
        %983 = vmatprep.subr.mxu0 0.0
        %984 = vmatpush1.msra.mxu0 0.0
        %985 = vmatprep.subr.mxu0 0.0
        %986 = vmatpush1.msra.mxu0 0.0
        %987 = vmatprep.subr.mxu0 0.0
        %988 = vmatpush1.msra.mxu0 0.0
        %989 = vmatprep.subr.mxu0 0.0
        %990 = vmatpush1.msra.mxu0 0.0
        %991 = vmatprep.subr.mxu0 0.0
        %992 = vmatpush1.msra.mxu0 0.0
        %993 = vmatprep.subr.mxu0 0.0
        %994 = vmatpush1.msra.mxu0 0.0
        %995 = vmatprep.subr.mxu0 0.0
        %996 = vmatpush1.msra.mxu0 0.0
        %997 = vmatprep.subr.mxu0 0.0
        %998 = vmatpush1.msra.mxu0 0.0
        %999 = vmatprep.subr.mxu0 0.0
        %1000 = vmatpush1.msra.mxu0 0.0
        %1001 = vmatprep.subr.mxu0 0.0
        %1002 = vmatpush1.msra.mxu0 0.0
        %1003 = vmatprep.subr.mxu0 0.0
        %1004 = vmatpush1.msra.mxu0 0.0
        %1005 = vmatprep.subr.mxu0 0.0
        %1006 = vmatpush1.msra.mxu0 0.0
        %1007 = vmatprep.subr.mxu0 0.0
        %1008 = vmatpush1.msra.mxu0 0.0
        %1009 = vmatprep.mubr.f32.mxu0 0.0
        %1010 = vmatmul.mubr.f32.gmra.mrb[0].mxu0 %v934
        %v1011 = vpop.f32.mrb[0].mxu0
        %v1012 = vadd.f32 0.0, %v1011
        %v1013 = vpop.f32.mrb[0].mxu0
        %v1014 = vadd.f32 0.0, %v1013
        %1015 = vmatprep.mubr.f32.mxu0 0.0
        %1016 = vmatmul.mubr.f32.gmra.mrb[0].mxu0 %v937
        %v1017 = vpop.f32.mrb[0].mxu0
        %v1018 = vadd.f32 0.0, %v1017
        %v1019 = vpop.f32.mrb[0].mxu0
        %v1020 = vadd.f32 0.0, %v1019
        %1021 = vmatprep.mubr.f32.mxu0 0.0
        %1022 = vmatmul.mubr.f32.gmra.mrb[0].mxu0 %v940
        %v1023 = vpop.f32.mrb[0].mxu0
        %v1024 = vadd.f32 0.0, %v1023
        %v1025 = vpop.f32.mrb[0].mxu0
        %v1026 = vadd.f32 0.0, %v1025
        %1027 = vmatprep.mubr.f32.mxu0 0.0
        %1028 = vmatmul.mubr.f32.gmra.mrb[0].mxu0 %v943
        %v1029 = vpop.f32.mrb[0].mxu0
        %v1030 = vadd.f32 0.0, %v1029
        %v1031 = vpop.f32.mrb[0].mxu0
        %v1032 = vadd.f32 0.0, %v1031
        %1033 = vdwg.mxu0
        %1034 = vmatprep.subr.mxu0 %v317
        %1035 = vmatpush1.msra.mxu0 %v316
        %1036 = vmatprep.subr.mxu0 %v358
        %1037 = vmatpush1.msra.mxu0 %v355
        %1038 = vmatprep.subr.mxu0 0.0
        %1039 = vmatpush1.msra.mxu0 0.0
        %1040 = vmatprep.subr.mxu0 0.0
        %1041 = vmatpush1.msra.mxu0 0.0
        %1042 = vmatprep.subr.mxu0 0.0
        %1043 = vmatpush1.msra.mxu0 0.0
        %1044 = vmatprep.subr.mxu0 0.0
        %1045 = vmatpush1.msra.mxu0 0.0
        %1046 = vmatprep.subr.mxu0 0.0
        %1047 = vmatpush1.msra.mxu0 0.0
        %1048 = vmatprep.subr.mxu0 0.0
        %1049 = vmatpush1.msra.mxu0 0.0
        %1050 = vmatprep.subr.mxu0 0.0
        %1051 = vmatpush1.msra.mxu0 0.0
        %1052 = vmatprep.subr.mxu0 0.0
        %1053 = vmatpush1.msra.mxu0 0.0
        %1054 = vmatprep.subr.mxu0 0.0
        %1055 = vmatpush1.msra.mxu0 0.0
        %1056 = vmatprep.subr.mxu0 0.0
        %1057 = vmatpush1.msra.mxu0 0.0
        %1058 = vmatprep.subr.mxu0 0.0
        %1059 = vmatpush1.msra.mxu0 0.0
        %1060 = vmatprep.subr.mxu0 0.0
        %1061 = vmatpush1.msra.mxu0 0.0
        %1062 = vmatprep.subr.mxu0 0.0
        %1063 = vmatpush1.msra.mxu0 0.0
        %1064 = vmatprep.subr.mxu0 0.0
        %1065 = vmatpush1.msra.mxu0 0.0
        %1066 = vmatprep.subr.mxu0 0.0
        %1067 = vmatpush1.msra.mxu0 0.0
        %1068 = vmatprep.subr.mxu0 0.0
        %1069 = vmatpush1.msra.mxu0 0.0
        %1070 = vmatprep.subr.mxu0 0.0
        %1071 = vmatpush1.msra.mxu0 0.0
        %1072 = vmatprep.subr.mxu0 0.0
        %1073 = vmatpush1.msra.mxu0 0.0
        %1074 = vmatprep.subr.mxu0 0.0
        %1075 = vmatpush1.msra.mxu0 0.0
        %1076 = vmatprep.subr.mxu0 0.0
        %1077 = vmatpush1.msra.mxu0 0.0
        %1078 = vmatprep.subr.mxu0 0.0
        %1079 = vmatpush1.msra.mxu0 0.0
        %1080 = vmatprep.subr.mxu0 0.0
        %1081 = vmatpush1.msra.mxu0 0.0
        %1082 = vmatprep.subr.mxu0 0.0
        %1083 = vmatpush1.msra.mxu0 0.0
        %1084 = vmatprep.subr.mxu0 0.0
        %1085 = vmatpush1.msra.mxu0 0.0
        %1086 = vmatprep.subr.mxu0 0.0
        %1087 = vmatpush1.msra.mxu0 0.0
        %1088 = vmatprep.subr.mxu0 0.0
        %1089 = vmatpush1.msra.mxu0 0.0
        %1090 = vmatprep.subr.mxu0 0.0
        %1091 = vmatpush1.msra.mxu0 0.0
        %1092 = vmatprep.subr.mxu0 0.0
        %1093 = vmatpush1.msra.mxu0 0.0
        %1094 = vmatprep.subr.mxu0 0.0
        %1095 = vmatpush1.msra.mxu0 0.0
        %1096 = vmatprep.subr.mxu0 0.0
        %1097 = vmatpush1.msra.mxu0 0.0
        %1098 = vmatprep.mubr.f32.mxu0 0.0
        %1099 = vmatmul.mubr.f32.gmra.mrb[0].mxu0 %v934
        %v1100 = vpop.f32.mrb[0].mxu0
        %v1101 = vadd.f32 0.0, %v1100
        %v1102 = vpop.f32.mrb[0].mxu0
        %v1103 = vadd.f32 0.0, %v1102
        %1104 = vmatprep.mubr.f32.mxu0 0.0
        %1105 = vmatmul.mubr.f32.gmra.mrb[0].mxu0 %v937
        %v1106 = vpop.f32.mrb[0].mxu0
        %v1107 = vadd.f32 0.0, %v1106
        %v1108 = vpop.f32.mrb[0].mxu0
        %v1109 = vadd.f32 0.0, %v1108
        %1110 = vmatprep.mubr.f32.mxu0 0.0
        %1111 = vmatmul.mubr.f32.gmra.mrb[0].mxu0 %v940
        %v1112 = vpop.f32.mrb[0].mxu0
        %v1113 = vadd.f32 0.0, %v1112
        %v1114 = vpop.f32.mrb[0].mxu0
        %v1115 = vadd.f32 0.0, %v1114
        %1116 = vmatprep.mubr.f32.mxu0 0.0
        %1117 = vmatmul.mubr.f32.gmra.mrb[0].mxu0 %v943
        %v1118 = vpop.f32.mrb[0].mxu0
        %v1119 = vadd.f32 0.0, %v1118
        %v1120 = vpop.f32.mrb[0].mxu0
        %v1121 = vadd.f32 0.0, %v1120
        %1122 = vdwg.mxu0
        %v1123 = vld [vmem:[%s3] sm:$0xff]
        %v1124 = vld [vmem:[%s3 + $0x8] sm:$0xff]
        %v1125 = vld [vmem:[%s3 + $0x10] sm:$0xff]
        %v1126 = vld [vmem:[%s3 + $0x18] sm:$0x3f]
        %v1128 = vsel %vm334, %v1123, 0
        %v1131 = vsel %vm334, %v1124, 0
        %v1134 = vsel %vm334, %v1125, 0
        %v1137 = vsel %vm334, %v1126, 0
        %v1140 = vsel %vm347, %v326, 0
        %v1143 = vsel %vm347, %v327, 0
        %v1146 = vsel %vm347, %v328, 0
        %v1149 = vsel %vm347, %v329, 0
        %1151 = vmatprep.subr.mxu0 %v323
        %1152 = vmatpush1.msra.mxu0 %v322
        %1153 = vmatprep.subr.mxu0 %v1143
        %1154 = vmatpush1.msra.mxu0 %v1140
        %1155 = vmatprep.subr.mxu0 0.0
        %1156 = vmatpush1.msra.mxu0 0.0
        %1157 = vmatprep.subr.mxu0 0.0
        %1158 = vmatpush1.msra.mxu0 0.0
        %1159 = vmatprep.subr.mxu0 0.0
        %1160 = vmatpush1.msra.mxu0 0.0
        %1161 = vmatprep.subr.mxu0 0.0
        %1162 = vmatpush1.msra.mxu0 0.0
        %1163 = vmatprep.subr.mxu0 0.0
        %1164 = vmatpush1.msra.mxu0 0.0
        %1165 = vmatprep.subr.mxu0 0.0
        %1166 = vmatpush1.msra.mxu0 0.0
        %1167 = vmatprep.subr.mxu0 0.0
        %1168 = vmatpush1.msra.mxu0 0.0
        %1169 = vmatprep.subr.mxu0 0.0
        %1170 = vmatpush1.msra.mxu0 0.0
        %1171 = vmatprep.subr.mxu0 0.0
        %1172 = vmatpush1.msra.mxu0 0.0
        %1173 = vmatprep.subr.mxu0 0.0
        %1174 = vmatpush1.msra.mxu0 0.0
        %1175 = vmatprep.subr.mxu0 0.0
        %1176 = vmatpush1.msra.mxu0 0.0
        %1177 = vmatprep.subr.mxu0 0.0
        %1178 = vmatpush1.msra.mxu0 0.0
        %1179 = vmatprep.subr.mxu0 0.0
        %1180 = vmatpush1.msra.mxu0 0.0
        %1181 = vmatprep.subr.mxu0 0.0
        %1182 = vmatpush1.msra.mxu0 0.0
        %1183 = vmatprep.subr.mxu0 0.0
        %1184 = vmatpush1.msra.mxu0 0.0
        %1185 = vmatprep.subr.mxu0 0.0
        %1186 = vmatpush1.msra.mxu0 0.0
        %1187 = vmatprep.subr.mxu0 0.0
        %1188 = vmatpush1.msra.mxu0 0.0
        %1189 = vmatprep.subr.mxu0 0.0
        %1190 = vmatpush1.msra.mxu0 0.0
        %1191 = vmatprep.subr.mxu0 0.0
        %1192 = vmatpush1.msra.mxu0 0.0
        %1193 = vmatprep.subr.mxu0 0.0
        %1194 = vmatpush1.msra.mxu0 0.0
        %1195 = vmatprep.subr.mxu0 0.0
        %1196 = vmatpush1.msra.mxu0 0.0
        %1197 = vmatprep.subr.mxu0 0.0
        %1198 = vmatpush1.msra.mxu0 0.0
        %1199 = vmatprep.subr.mxu0 0.0
        %1200 = vmatpush1.msra.mxu0 0.0
        %1201 = vmatprep.subr.mxu0 0.0
        %1202 = vmatpush1.msra.mxu0 0.0
        %1203 = vmatprep.subr.mxu0 0.0
        %1204 = vmatpush1.msra.mxu0 0.0
        %1205 = vmatprep.subr.mxu0 0.0
        %1206 = vmatpush1.msra.mxu0 0.0
        %1207 = vmatprep.subr.mxu0 0.0
        %1208 = vmatpush1.msra.mxu0 0.0
        %1209 = vmatprep.subr.mxu0 0.0
        %1210 = vmatpush1.msra.mxu0 0.0
        %1211 = vmatprep.subr.mxu0 0.0
        %1212 = vmatpush1.msra.mxu0 0.0
        %1213 = vmatprep.subr.mxu0 0.0
        %1214 = vmatpush1.msra.mxu0 0.0
        %1215 = vmatprep.mubr.f32.mxu0 0.0
        %1216 = vmatmul.mubr.f32.gmra.mrb[0].mxu0 %v1128
        %v1217 = vpop.f32.mrb[0].mxu0
        %v1218 = vadd.f32 0.0, %v1217
        %v1219 = vpop.f32.mrb[0].mxu0
        %v1220 = vadd.f32 0.0, %v1219
        %1221 = vmatprep.mubr.f32.mxu0 0.0
        %1222 = vmatmul.mubr.f32.gmra.mrb[0].mxu0 %v1131
        %v1223 = vpop.f32.mrb[0].mxu0
        %v1224 = vadd.f32 0.0, %v1223
        %v1225 = vpop.f32.mrb[0].mxu0
        %v1226 = vadd.f32 0.0, %v1225
        %1227 = vmatprep.mubr.f32.mxu0 0.0
        %1228 = vmatmul.mubr.f32.gmra.mrb[0].mxu0 %v1134
        %v1229 = vpop.f32.mrb[0].mxu0
        %v1230 = vadd.f32 0.0, %v1229
        %v1231 = vpop.f32.mrb[0].mxu0
        %v1232 = vadd.f32 0.0, %v1231
        %1233 = vmatprep.mubr.f32.mxu0 0.0
        %1234 = vmatmul.mubr.f32.gmra.mrb[0].mxu0 %v1137
        %v1235 = vpop.f32.mrb[0].mxu0
        %v1236 = vadd.f32 0.0, %v1235
        %v1237 = vpop.f32.mrb[0].mxu0
        %v1238 = vadd.f32 0.0, %v1237
        %1239 = vdwg.mxu0
        %1240 = vmatprep.subr.mxu0 %v325
        %1241 = vmatpush1.msra.mxu0 %v324
        %1242 = vmatprep.subr.mxu0 %v1149
        %1243 = vmatpush1.msra.mxu0 %v1146
        %1244 = vmatprep.subr.mxu0 0.0
        %1245 = vmatpush1.msra.mxu0 0.0
        %1246 = vmatprep.subr.mxu0 0.0
        %1247 = vmatpush1.msra.mxu0 0.0
        %1248 = vmatprep.subr.mxu0 0.0
        %1249 = vmatpush1.msra.mxu0 0.0
        %1250 = vmatprep.subr.mxu0 0.0
        %1251 = vmatpush1.msra.mxu0 0.0
        %1252 = vmatprep.subr.mxu0 0.0
        %1253 = vmatpush1.msra.mxu0 0.0
        %1254 = vmatprep.subr.mxu0 0.0
        %1255 = vmatpush1.msra.mxu0 0.0
        %1256 = vmatprep.subr.mxu0 0.0
        %1257 = vmatpush1.msra.mxu0 0.0
        %1258 = vmatprep.subr.mxu0 0.0
        %1259 = vmatpush1.msra.mxu0 0.0
        %1260 = vmatprep.subr.mxu0 0.0
        %1261 = vmatpush1.msra.mxu0 0.0
        %1262 = vmatprep.subr.mxu0 0.0
        %1263 = vmatpush1.msra.mxu0 0.0
        %1264 = vmatprep.subr.mxu0 0.0
        %1265 = vmatpush1.msra.mxu0 0.0
        %1266 = vmatprep.subr.mxu0 0.0
        %1267 = vmatpush1.msra.mxu0 0.0
        %1268 = vmatprep.subr.mxu0 0.0
        %1269 = vmatpush1.msra.mxu0 0.0
        %1270 = vmatprep.subr.mxu0 0.0
        %1271 = vmatpush1.msra.mxu0 0.0
        %1272 = vmatprep.subr.mxu0 0.0
        %1273 = vmatpush1.msra.mxu0 0.0
        %1274 = vmatprep.subr.mxu0 0.0
        %1275 = vmatpush1.msra.mxu0 0.0
        %1276 = vmatprep.subr.mxu0 0.0
        %1277 = vmatpush1.msra.mxu0 0.0
        %1278 = vmatprep.subr.mxu0 0.0
        %1279 = vmatpush1.msra.mxu0 0.0
        %1280 = vmatprep.subr.mxu0 0.0
        %1281 = vmatpush1.msra.mxu0 0.0
        %1282 = vmatprep.subr.mxu0 0.0
        %1283 = vmatpush1.msra.mxu0 0.0
        %1284 = vmatprep.subr.mxu0 0.0
        %1285 = vmatpush1.msra.mxu0 0.0
        %1286 = vmatprep.subr.mxu0 0.0
        %1287 = vmatpush1.msra.mxu0 0.0
        %1288 = vmatprep.subr.mxu0 0.0
        %1289 = vmatpush1.msra.mxu0 0.0
        %1290 = vmatprep.subr.mxu0 0.0
        %1291 = vmatpush1.msra.mxu0 0.0
        %1292 = vmatprep.subr.mxu0 0.0
        %1293 = vmatpush1.msra.mxu0 0.0
        %1294 = vmatprep.subr.mxu0 0.0
        %1295 = vmatpush1.msra.mxu0 0.0
        %1296 = vmatprep.subr.mxu0 0.0
        %1297 = vmatpush1.msra.mxu0 0.0
        %1298 = vmatprep.subr.mxu0 0.0
        %1299 = vmatpush1.msra.mxu0 0.0
        %1300 = vmatprep.subr.mxu0 0.0
        %1301 = vmatpush1.msra.mxu0 0.0
        %1302 = vmatprep.subr.mxu0 0.0
        %1303 = vmatpush1.msra.mxu0 0.0
        %1304 = vmatprep.mubr.f32.mxu0 0.0
        %1305 = vmatmul.mubr.f32.gmra.mrb[0].mxu0 %v1128
        %v1306 = vpop.f32.mrb[0].mxu0
        %v1307 = vadd.f32 0.0, %v1306
        %v1308 = vpop.f32.mrb[0].mxu0
        %v1309 = vadd.f32 0.0, %v1308
        %1310 = vmatprep.mubr.f32.mxu0 0.0
        %1311 = vmatmul.mubr.f32.gmra.mrb[0].mxu0 %v1131
        %v1312 = vpop.f32.mrb[0].mxu0
        %v1313 = vadd.f32 0.0, %v1312
        %v1314 = vpop.f32.mrb[0].mxu0
        %v1315 = vadd.f32 0.0, %v1314
        %1316 = vmatprep.mubr.f32.mxu0 0.0
        %1317 = vmatmul.mubr.f32.gmra.mrb[0].mxu0 %v1134
        %v1318 = vpop.f32.mrb[0].mxu0
        %v1319 = vadd.f32 0.0, %v1318
        %v1320 = vpop.f32.mrb[0].mxu0
        %v1321 = vadd.f32 0.0, %v1320
        %1322 = vmatprep.mubr.f32.mxu0 0.0
        %1323 = vmatmul.mubr.f32.gmra.mrb[0].mxu0 %v1137
        %v1324 = vpop.f32.mrb[0].mxu0
        %v1325 = vadd.f32 0.0, %v1324
        %v1326 = vpop.f32.mrb[0].mxu0
        %v1327 = vadd.f32 0.0, %v1326
        %1328 = vdwg.mxu0
        %s1329 = scalar_lea.vmem %s3, 32
        %v1330 = vld [vmem:[%s1329] sm:$0xff]
        %v1331 = vld [vmem:[%s1329 + $0x8] sm:$0xff]
        %v1332 = vld [vmem:[%s1329 + $0x10] sm:$0xff]
        %v1333 = vld [vmem:[%s1329 + $0x18] sm:$0x3f]
        %v1335 = vsel %vm334, %v1330, 0
        %v1338 = vsel %vm334, %v1331, 0
        %v1341 = vsel %vm334, %v1332, 0
        %v1344 = vsel %vm334, %v1333, 0
        %1346 = vmatprep.subr.mxu0 %v323
        %1347 = vmatpush1.msra.mxu0 %v322
        %1348 = vmatprep.subr.mxu0 %v1143
        %1349 = vmatpush1.msra.mxu0 %v1140
        %1350 = vmatprep.subr.mxu0 0.0
        %1351 = vmatpush1.msra.mxu0 0.0
        %1352 = vmatprep.subr.mxu0 0.0
        %1353 = vmatpush1.msra.mxu0 0.0
        %1354 = vmatprep.subr.mxu0 0.0
        %1355 = vmatpush1.msra.mxu0 0.0
        %1356 = vmatprep.subr.mxu0 0.0
        %1357 = vmatpush1.msra.mxu0 0.0
        %1358 = vmatprep.subr.mxu0 0.0
        %1359 = vmatpush1.msra.mxu0 0.0
        %1360 = vmatprep.subr.mxu0 0.0
        %1361 = vmatpush1.msra.mxu0 0.0
        %1362 = vmatprep.subr.mxu0 0.0
        %1363 = vmatpush1.msra.mxu0 0.0
        %1364 = vmatprep.subr.mxu0 0.0
        %1365 = vmatpush1.msra.mxu0 0.0
        %1366 = vmatprep.subr.mxu0 0.0
        %1367 = vmatpush1.msra.mxu0 0.0
        %1368 = vmatprep.subr.mxu0 0.0
        %1369 = vmatpush1.msra.mxu0 0.0
        %1370 = vmatprep.subr.mxu0 0.0
        %1371 = vmatpush1.msra.mxu0 0.0
        %1372 = vmatprep.subr.mxu0 0.0
        %1373 = vmatpush1.msra.mxu0 0.0
        %1374 = vmatprep.subr.mxu0 0.0
        %1375 = vmatpush1.msra.mxu0 0.0
        %1376 = vmatprep.subr.mxu0 0.0
        %1377 = vmatpush1.msra.mxu0 0.0
        %1378 = vmatprep.subr.mxu0 0.0
        %1379 = vmatpush1.msra.mxu0 0.0
        %1380 = vmatprep.subr.mxu0 0.0
        %1381 = vmatpush1.msra.mxu0 0.0
        %1382 = vmatprep.subr.mxu0 0.0
        %1383 = vmatpush1.msra.mxu0 0.0
        %1384 = vmatprep.subr.mxu0 0.0
        %1385 = vmatpush1.msra.mxu0 0.0
        %1386 = vmatprep.subr.mxu0 0.0
        %1387 = vmatpush1.msra.mxu0 0.0
        %1388 = vmatprep.subr.mxu0 0.0
        %1389 = vmatpush1.msra.mxu0 0.0
        %1390 = vmatprep.subr.mxu0 0.0
        %1391 = vmatpush1.msra.mxu0 0.0
        %1392 = vmatprep.subr.mxu0 0.0
        %1393 = vmatpush1.msra.mxu0 0.0
        %1394 = vmatprep.subr.mxu0 0.0
        %1395 = vmatpush1.msra.mxu0 0.0
        %1396 = vmatprep.subr.mxu0 0.0
        %1397 = vmatpush1.msra.mxu0 0.0
        %1398 = vmatprep.subr.mxu0 0.0
        %1399 = vmatpush1.msra.mxu0 0.0
        %1400 = vmatprep.subr.mxu0 0.0
        %1401 = vmatpush1.msra.mxu0 0.0
        %1402 = vmatprep.subr.mxu0 0.0
        %1403 = vmatpush1.msra.mxu0 0.0
        %1404 = vmatprep.subr.mxu0 0.0
        %1405 = vmatpush1.msra.mxu0 0.0
        %1406 = vmatprep.subr.mxu0 0.0
        %1407 = vmatpush1.msra.mxu0 0.0
        %1408 = vmatprep.subr.mxu0 0.0
        %1409 = vmatpush1.msra.mxu0 0.0
        %1410 = vmatprep.mubr.f32.mxu0 0.0
        %1411 = vmatmul.mubr.f32.gmra.mrb[0].mxu0 %v1335
        %v1412 = vpop.f32.mrb[0].mxu0
        %v1413 = vadd.f32 0.0, %v1412
        %v1414 = vpop.f32.mrb[0].mxu0
        %v1415 = vadd.f32 0.0, %v1414
        %1416 = vmatprep.mubr.f32.mxu0 0.0
        %1417 = vmatmul.mubr.f32.gmra.mrb[0].mxu0 %v1338
        %v1418 = vpop.f32.mrb[0].mxu0
        %v1419 = vadd.f32 0.0, %v1418
        %v1420 = vpop.f32.mrb[0].mxu0
        %v1421 = vadd.f32 0.0, %v1420
        %1422 = vmatprep.mubr.f32.mxu0 0.0
        %1423 = vmatmul.mubr.f32.gmra.mrb[0].mxu0 %v1341
        %v1424 = vpop.f32.mrb[0].mxu0
        %v1425 = vadd.f32 0.0, %v1424
        %v1426 = vpop.f32.mrb[0].mxu0
        %v1427 = vadd.f32 0.0, %v1426
        %1428 = vmatprep.mubr.f32.mxu0 0.0
        %1429 = vmatmul.mubr.f32.gmra.mrb[0].mxu0 %v1344
        %v1430 = vpop.f32.mrb[0].mxu0
        %v1431 = vadd.f32 0.0, %v1430
        %v1432 = vpop.f32.mrb[0].mxu0
        %v1433 = vadd.f32 0.0, %v1432
        %1434 = vdwg.mxu0
        %1435 = vmatprep.subr.mxu0 %v325
        %1436 = vmatpush1.msra.mxu0 %v324
        %1437 = vmatprep.subr.mxu0 %v1149
        %1438 = vmatpush1.msra.mxu0 %v1146
        %1439 = vmatprep.subr.mxu0 0.0
        %1440 = vmatpush1.msra.mxu0 0.0
        %1441 = vmatprep.subr.mxu0 0.0
        %1442 = vmatpush1.msra.mxu0 0.0
        %1443 = vmatprep.subr.mxu0 0.0
        %1444 = vmatpush1.msra.mxu0 0.0
        %1445 = vmatprep.subr.mxu0 0.0
        %1446 = vmatpush1.msra.mxu0 0.0
        %1447 = vmatprep.subr.mxu0 0.0
        %1448 = vmatpush1.msra.mxu0 0.0
        %1449 = vmatprep.subr.mxu0 0.0
        %1450 = vmatpush1.msra.mxu0 0.0
        %1451 = vmatprep.subr.mxu0 0.0
        %1452 = vmatpush1.msra.mxu0 0.0
        %1453 = vmatprep.subr.mxu0 0.0
        %1454 = vmatpush1.msra.mxu0 0.0
        %1455 = vmatprep.subr.mxu0 0.0
        %1456 = vmatpush1.msra.mxu0 0.0
        %1457 = vmatprep.subr.mxu0 0.0
        %1458 = vmatpush1.msra.mxu0 0.0
        %1459 = vmatprep.subr.mxu0 0.0
        %1460 = vmatpush1.msra.mxu0 0.0
        %1461 = vmatprep.subr.mxu0 0.0
        %1462 = vmatpush1.msra.mxu0 0.0
        %1463 = vmatprep.subr.mxu0 0.0
        %1464 = vmatpush1.msra.mxu0 0.0
        %1465 = vmatprep.subr.mxu0 0.0
        %1466 = vmatpush1.msra.mxu0 0.0
        %1467 = vmatprep.subr.mxu0 0.0
        %1468 = vmatpush1.msra.mxu0 0.0
        %1469 = vmatprep.subr.mxu0 0.0
        %1470 = vmatpush1.msra.mxu0 0.0
        %1471 = vmatprep.subr.mxu0 0.0
        %1472 = vmatpush1.msra.mxu0 0.0
        %1473 = vmatprep.subr.mxu0 0.0
        %1474 = vmatpush1.msra.mxu0 0.0
        %1475 = vmatprep.subr.mxu0 0.0
        %1476 = vmatpush1.msra.mxu0 0.0
        %1477 = vmatprep.subr.mxu0 0.0
        %1478 = vmatpush1.msra.mxu0 0.0
        %1479 = vmatprep.subr.mxu0 0.0
        %1480 = vmatpush1.msra.mxu0 0.0
        %1481 = vmatprep.subr.mxu0 0.0
        %1482 = vmatpush1.msra.mxu0 0.0
        %1483 = vmatprep.subr.mxu0 0.0
        %1484 = vmatpush1.msra.mxu0 0.0
        %1485 = vmatprep.subr.mxu0 0.0
        %1486 = vmatpush1.msra.mxu0 0.0
        %1487 = vmatprep.subr.mxu0 0.0
        %1488 = vmatpush1.msra.mxu0 0.0
        %1489 = vmatprep.subr.mxu0 0.0
        %1490 = vmatpush1.msra.mxu0 0.0
        %1491 = vmatprep.subr.mxu0 0.0
        %1492 = vmatpush1.msra.mxu0 0.0
        %1493 = vmatprep.subr.mxu0 0.0
        %1494 = vmatpush1.msra.mxu0 0.0
        %1495 = vmatprep.subr.mxu0 0.0
        %1496 = vmatpush1.msra.mxu0 0.0
        %1497 = vmatprep.subr.mxu0 0.0
        %1498 = vmatpush1.msra.mxu0 0.0
        %1499 = vmatprep.mubr.f32.mxu0 0.0
        %1500 = vmatmul.mubr.f32.gmra.mrb[0].mxu0 %v1335
        %v1501 = vpop.f32.mrb[0].mxu0
        %v1502 = vadd.f32 0.0, %v1501
        %v1503 = vpop.f32.mrb[0].mxu0
        %v1504 = vadd.f32 0.0, %v1503
        %1505 = vmatprep.mubr.f32.mxu0 0.0
        %1506 = vmatmul.mubr.f32.gmra.mrb[0].mxu0 %v1338
        %v1507 = vpop.f32.mrb[0].mxu0
        %v1508 = vadd.f32 0.0, %v1507
        %v1509 = vpop.f32.mrb[0].mxu0
        %v1510 = vadd.f32 0.0, %v1509
        %1511 = vmatprep.mubr.f32.mxu0 0.0
        %1512 = vmatmul.mubr.f32.gmra.mrb[0].mxu0 %v1341
        %v1513 = vpop.f32.mrb[0].mxu0
        %v1514 = vadd.f32 0.0, %v1513
        %v1515 = vpop.f32.mrb[0].mxu0
        %v1516 = vadd.f32 0.0, %v1515
        %1517 = vmatprep.mubr.f32.mxu0 0.0
        %1518 = vmatmul.mubr.f32.gmra.mrb[0].mxu0 %v1344
        %v1519 = vpop.f32.mrb[0].mxu0
        %v1520 = vadd.f32 0.0, %v1519
        %v1521 = vpop.f32.mrb[0].mxu0
        %v1522 = vadd.f32 0.0, %v1521
        %1523 = vdwg.mxu0
        %s1524 = scalar_lea.vmem %s3, 64
        %v1525 = vld [vmem:[%s1524] sm:$0xff]
        %v1526 = vld [vmem:[%s1524 + $0x8] sm:$0xff]
        %v1527 = vld [vmem:[%s1524 + $0x10] sm:$0xff]
        %v1528 = vld [vmem:[%s1524 + $0x18] sm:$0x3f]
        %v1530 = vsel %vm334, %v1525, 0
        %v1533 = vsel %vm334, %v1526, 0
        %v1536 = vsel %vm334, %v1527, 0
        %v1539 = vsel %vm334, %v1528, 0
        %1541 = vmatprep.subr.mxu0 %v323
        %1542 = vmatpush1.msra.mxu0 %v322
        %1543 = vmatprep.subr.mxu0 %v1143
        %1544 = vmatpush1.msra.mxu0 %v1140
        %1545 = vmatprep.subr.mxu0 0.0
        %1546 = vmatpush1.msra.mxu0 0.0
        %1547 = vmatprep.subr.mxu0 0.0
        %1548 = vmatpush1.msra.mxu0 0.0
        %1549 = vmatprep.subr.mxu0 0.0
        %1550 = vmatpush1.msra.mxu0 0.0
        %1551 = vmatprep.subr.mxu0 0.0
        %1552 = vmatpush1.msra.mxu0 0.0
        %1553 = vmatprep.subr.mxu0 0.0
        %1554 = vmatpush1.msra.mxu0 0.0
        %1555 = vmatprep.subr.mxu0 0.0
        %1556 = vmatpush1.msra.mxu0 0.0
        %1557 = vmatprep.subr.mxu0 0.0
        %1558 = vmatpush1.msra.mxu0 0.0
        %1559 = vmatprep.subr.mxu0 0.0
        %1560 = vmatpush1.msra.mxu0 0.0
        %1561 = vmatprep.subr.mxu0 0.0
        %1562 = vmatpush1.msra.mxu0 0.0
        %1563 = vmatprep.subr.mxu0 0.0
        %1564 = vmatpush1.msra.mxu0 0.0
        %1565 = vmatprep.subr.mxu0 0.0
        %1566 = vmatpush1.msra.mxu0 0.0
        %1567 = vmatprep.subr.mxu0 0.0
        %1568 = vmatpush1.msra.mxu0 0.0
        %1569 = vmatprep.subr.mxu0 0.0
        %1570 = vmatpush1.msra.mxu0 0.0
        %1571 = vmatprep.subr.mxu0 0.0
        %1572 = vmatpush1.msra.mxu0 0.0
        %1573 = vmatprep.subr.mxu0 0.0
        %1574 = vmatpush1.msra.mxu0 0.0
        %1575 = vmatprep.subr.mxu0 0.0
        %1576 = vmatpush1.msra.mxu0 0.0
        %1577 = vmatprep.subr.mxu0 0.0
        %1578 = vmatpush1.msra.mxu0 0.0
        %1579 = vmatprep.subr.mxu0 0.0
        %1580 = vmatpush1.msra.mxu0 0.0
        %1581 = vmatprep.subr.mxu0 0.0
        %1582 = vmatpush1.msra.mxu0 0.0
        %1583 = vmatprep.subr.mxu0 0.0
        %1584 = vmatpush1.msra.mxu0 0.0
        %1585 = vmatprep.subr.mxu0 0.0
        %1586 = vmatpush1.msra.mxu0 0.0
        %1587 = vmatprep.subr.mxu0 0.0
        %1588 = vmatpush1.msra.mxu0 0.0
        %1589 = vmatprep.subr.mxu0 0.0
        %1590 = vmatpush1.msra.mxu0 0.0
        %1591 = vmatprep.subr.mxu0 0.0
        %1592 = vmatpush1.msra.mxu0 0.0
        %1593 = vmatprep.subr.mxu0 0.0
        %1594 = vmatpush1.msra.mxu0 0.0
        %1595 = vmatprep.subr.mxu0 0.0
        %1596 = vmatpush1.msra.mxu0 0.0
        %1597 = vmatprep.subr.mxu0 0.0
        %1598 = vmatpush1.msra.mxu0 0.0
        %1599 = vmatprep.subr.mxu0 0.0
        %1600 = vmatpush1.msra.mxu0 0.0
        %1601 = vmatprep.subr.mxu0 0.0
        %1602 = vmatpush1.msra.mxu0 0.0
        %1603 = vmatprep.subr.mxu0 0.0
        %1604 = vmatpush1.msra.mxu0 0.0
        %1605 = vmatprep.mubr.f32.mxu0 0.0
        %1606 = vmatmul.mubr.f32.gmra.mrb[0].mxu0 %v1530
        %v1607 = vpop.f32.mrb[0].mxu0
        %v1608 = vadd.f32 0.0, %v1607
        %v1609 = vpop.f32.mrb[0].mxu0
        %v1610 = vadd.f32 0.0, %v1609
        %1611 = vmatprep.mubr.f32.mxu0 0.0
        %1612 = vmatmul.mubr.f32.gmra.mrb[0].mxu0 %v1533
        %v1613 = vpop.f32.mrb[0].mxu0
        %v1614 = vadd.f32 0.0, %v1613
        %v1615 = vpop.f32.mrb[0].mxu0
        %v1616 = vadd.f32 0.0, %v1615
        %1617 = vmatprep.mubr.f32.mxu0 0.0
        %1618 = vmatmul.mubr.f32.gmra.mrb[0].mxu0 %v1536
        %v1619 = vpop.f32.mrb[0].mxu0
        %v1620 = vadd.f32 0.0, %v1619
        %v1621 = vpop.f32.mrb[0].mxu0
        %v1622 = vadd.f32 0.0, %v1621
        %1623 = vmatprep.mubr.f32.mxu0 0.0
        %1624 = vmatmul.mubr.f32.gmra.mrb[0].mxu0 %v1539
        %v1625 = vpop.f32.mrb[0].mxu0
        %v1626 = vadd.f32 0.0, %v1625
        %v1627 = vpop.f32.mrb[0].mxu0
        %v1628 = vadd.f32 0.0, %v1627
        %1629 = vdwg.mxu0
        %1630 = vmatprep.subr.mxu0 %v325
        %1631 = vmatpush1.msra.mxu0 %v324
        %1632 = vmatprep.subr.mxu0 %v1149
        %1633 = vmatpush1.msra.mxu0 %v1146
        %1634 = vmatprep.subr.mxu0 0.0
        %1635 = vmatpush1.msra.mxu0 0.0
        %1636 = vmatprep.subr.mxu0 0.0
        %1637 = vmatpush1.msra.mxu0 0.0
        %1638 = vmatprep.subr.mxu0 0.0
        %1639 = vmatpush1.msra.mxu0 0.0
        %1640 = vmatprep.subr.mxu0 0.0
        %1641 = vmatpush1.msra.mxu0 0.0
        %1642 = vmatprep.subr.mxu0 0.0
        %1643 = vmatpush1.msra.mxu0 0.0
        %1644 = vmatprep.subr.mxu0 0.0
        %1645 = vmatpush1.msra.mxu0 0.0
        %1646 = vmatprep.subr.mxu0 0.0
        %1647 = vmatpush1.msra.mxu0 0.0
        %1648 = vmatprep.subr.mxu0 0.0
        %1649 = vmatpush1.msra.mxu0 0.0
        %1650 = vmatprep.subr.mxu0 0.0
        %1651 = vmatpush1.msra.mxu0 0.0
        %1652 = vmatprep.subr.mxu0 0.0
        %1653 = vmatpush1.msra.mxu0 0.0
        %1654 = vmatprep.subr.mxu0 0.0
        %1655 = vmatpush1.msra.mxu0 0.0
        %1656 = vmatprep.subr.mxu0 0.0
        %1657 = vmatpush1.msra.mxu0 0.0
        %1658 = vmatprep.subr.mxu0 0.0
        %1659 = vmatpush1.msra.mxu0 0.0
        %1660 = vmatprep.subr.mxu0 0.0
        %1661 = vmatpush1.msra.mxu0 0.0
        %1662 = vmatprep.subr.mxu0 0.0
        %1663 = vmatpush1.msra.mxu0 0.0
        %1664 = vmatprep.subr.mxu0 0.0
        %1665 = vmatpush1.msra.mxu0 0.0
        %1666 = vmatprep.subr.mxu0 0.0
        %1667 = vmatpush1.msra.mxu0 0.0
        %1668 = vmatprep.subr.mxu0 0.0
        %1669 = vmatpush1.msra.mxu0 0.0
        %1670 = vmatprep.subr.mxu0 0.0
        %1671 = vmatpush1.msra.mxu0 0.0
        %1672 = vmatprep.subr.mxu0 0.0
        %1673 = vmatpush1.msra.mxu0 0.0
        %1674 = vmatprep.subr.mxu0 0.0
        %1675 = vmatpush1.msra.mxu0 0.0
        %1676 = vmatprep.subr.mxu0 0.0
        %1677 = vmatpush1.msra.mxu0 0.0
        %1678 = vmatprep.subr.mxu0 0.0
        %1679 = vmatpush1.msra.mxu0 0.0
        %1680 = vmatprep.subr.mxu0 0.0
        %1681 = vmatpush1.msra.mxu0 0.0
        %1682 = vmatprep.subr.mxu0 0.0
        %1683 = vmatpush1.msra.mxu0 0.0
        %1684 = vmatprep.subr.mxu0 0.0
        %1685 = vmatpush1.msra.mxu0 0.0
        %1686 = vmatprep.subr.mxu0 0.0
        %1687 = vmatpush1.msra.mxu0 0.0
        %1688 = vmatprep.subr.mxu0 0.0
        %1689 = vmatpush1.msra.mxu0 0.0
        %1690 = vmatprep.subr.mxu0 0.0
        %1691 = vmatpush1.msra.mxu0 0.0
        %1692 = vmatprep.subr.mxu0 0.0
        %1693 = vmatpush1.msra.mxu0 0.0
        %1694 = vmatprep.mubr.f32.mxu0 0.0
        %1695 = vmatmul.mubr.f32.gmra.mrb[0].mxu0 %v1530
        %v1696 = vpop.f32.mrb[0].mxu0
        %v1697 = vadd.f32 0.0, %v1696
        %v1698 = vpop.f32.mrb[0].mxu0
        %v1699 = vadd.f32 0.0, %v1698
        %1700 = vmatprep.mubr.f32.mxu0 0.0
        %1701 = vmatmul.mubr.f32.gmra.mrb[0].mxu0 %v1533
        %v1702 = vpop.f32.mrb[0].mxu0
        %v1703 = vadd.f32 0.0, %v1702
        %v1704 = vpop.f32.mrb[0].mxu0
        %v1705 = vadd.f32 0.0, %v1704
        %1706 = vmatprep.mubr.f32.mxu0 0.0
        %1707 = vmatmul.mubr.f32.gmra.mrb[0].mxu0 %v1536
        %v1708 = vpop.f32.mrb[0].mxu0
        %v1709 = vadd.f32 0.0, %v1708
        %v1710 = vpop.f32.mrb[0].mxu0
        %v1711 = vadd.f32 0.0, %v1710
        %1712 = vmatprep.mubr.f32.mxu0 0.0
        %1713 = vmatmul.mubr.f32.gmra.mrb[0].mxu0 %v1539
        %v1714 = vpop.f32.mrb[0].mxu0
        %v1715 = vadd.f32 0.0, %v1714
        %v1716 = vpop.f32.mrb[0].mxu0
        %v1717 = vadd.f32 0.0, %v1716
        %1718 = vdwg.mxu0
        %s1719 = scalar_lea.vmem %s3, 96
        %v1720 = vld [vmem:[%s1719] sm:$0xff]
        %v1721 = vld [vmem:[%s1719 + $0x8] sm:$0xff]
        %v1722 = vld [vmem:[%s1719 + $0x10] sm:$0xff]
        %v1723 = vld [vmem:[%s1719 + $0x18] sm:$0x3f]
        %v1725 = vsel %vm334, %v1720, 0
        %v1728 = vsel %vm334, %v1721, 0
        %v1731 = vsel %vm334, %v1722, 0
        %v1734 = vsel %vm334, %v1723, 0
        %1736 = vmatprep.subr.mxu0 %v323
        %1737 = vmatpush1.msra.mxu0 %v322
        %1738 = vmatprep.subr.mxu0 %v1143
        %1739 = vmatpush1.msra.mxu0 %v1140
        %1740 = vmatprep.subr.mxu0 0.0
        %1741 = vmatpush1.msra.mxu0 0.0
        %1742 = vmatprep.subr.mxu0 0.0
        %1743 = vmatpush1.msra.mxu0 0.0
        %1744 = vmatprep.subr.mxu0 0.0
        %1745 = vmatpush1.msra.mxu0 0.0
        %1746 = vmatprep.subr.mxu0 0.0
        %1747 = vmatpush1.msra.mxu0 0.0
        %1748 = vmatprep.subr.mxu0 0.0
        %1749 = vmatpush1.msra.mxu0 0.0
        %1750 = vmatprep.subr.mxu0 0.0
        %1751 = vmatpush1.msra.mxu0 0.0
        %1752 = vmatprep.subr.mxu0 0.0
        %1753 = vmatpush1.msra.mxu0 0.0
        %1754 = vmatprep.subr.mxu0 0.0
        %1755 = vmatpush1.msra.mxu0 0.0
        %1756 = vmatprep.subr.mxu0 0.0
        %1757 = vmatpush1.msra.mxu0 0.0
        %1758 = vmatprep.subr.mxu0 0.0
        %1759 = vmatpush1.msra.mxu0 0.0
        %1760 = vmatprep.subr.mxu0 0.0
        %1761 = vmatpush1.msra.mxu0 0.0
        %1762 = vmatprep.subr.mxu0 0.0
        %1763 = vmatpush1.msra.mxu0 0.0
        %1764 = vmatprep.subr.mxu0 0.0
        %1765 = vmatpush1.msra.mxu0 0.0
        %1766 = vmatprep.subr.mxu0 0.0
        %1767 = vmatpush1.msra.mxu0 0.0
        %1768 = vmatprep.subr.mxu0 0.0
        %1769 = vmatpush1.msra.mxu0 0.0
        %1770 = vmatprep.subr.mxu0 0.0
        %1771 = vmatpush1.msra.mxu0 0.0
        %1772 = vmatprep.subr.mxu0 0.0
        %1773 = vmatpush1.msra.mxu0 0.0
        %1774 = vmatprep.subr.mxu0 0.0
        %1775 = vmatpush1.msra.mxu0 0.0
        %1776 = vmatprep.subr.mxu0 0.0
        %1777 = vmatpush1.msra.mxu0 0.0
        %1778 = vmatprep.subr.mxu0 0.0
        %1779 = vmatpush1.msra.mxu0 0.0
        %1780 = vmatprep.subr.mxu0 0.0
        %1781 = vmatpush1.msra.mxu0 0.0
        %1782 = vmatprep.subr.mxu0 0.0
        %1783 = vmatpush1.msra.mxu0 0.0
        %1784 = vmatprep.subr.mxu0 0.0
        %1785 = vmatpush1.msra.mxu0 0.0
        %1786 = vmatprep.subr.mxu0 0.0
        %1787 = vmatpush1.msra.mxu0 0.0
        %1788 = vmatprep.subr.mxu0 0.0
        %1789 = vmatpush1.msra.mxu0 0.0
        %1790 = vmatprep.subr.mxu0 0.0
        %1791 = vmatpush1.msra.mxu0 0.0
        %1792 = vmatprep.subr.mxu0 0.0
        %1793 = vmatpush1.msra.mxu0 0.0
        %1794 = vmatprep.subr.mxu0 0.0
        %1795 = vmatpush1.msra.mxu0 0.0
        %1796 = vmatprep.subr.mxu0 0.0
        %1797 = vmatpush1.msra.mxu0 0.0
        %1798 = vmatprep.subr.mxu0 0.0
        %1799 = vmatpush1.msra.mxu0 0.0
        %1800 = vmatprep.mubr.f32.mxu0 0.0
        %1801 = vmatmul.mubr.f32.gmra.mrb[0].mxu0 %v1725
        %v1802 = vpop.f32.mrb[0].mxu0
        %v1803 = vadd.f32 0.0, %v1802
        %v1804 = vpop.f32.mrb[0].mxu0
        %v1805 = vadd.f32 0.0, %v1804
        %1806 = vmatprep.mubr.f32.mxu0 0.0
        %1807 = vmatmul.mubr.f32.gmra.mrb[0].mxu0 %v1728
        %v1808 = vpop.f32.mrb[0].mxu0
        %v1809 = vadd.f32 0.0, %v1808
        %v1810 = vpop.f32.mrb[0].mxu0
        %v1811 = vadd.f32 0.0, %v1810
        %1812 = vmatprep.mubr.f32.mxu0 0.0
        %1813 = vmatmul.mubr.f32.gmra.mrb[0].mxu0 %v1731
        %v1814 = vpop.f32.mrb[0].mxu0
        %v1815 = vadd.f32 0.0, %v1814
        %v1816 = vpop.f32.mrb[0].mxu0
        %v1817 = vadd.f32 0.0, %v1816
        %1818 = vmatprep.mubr.f32.mxu0 0.0
        %1819 = vmatmul.mubr.f32.gmra.mrb[0].mxu0 %v1734
        %v1820 = vpop.f32.mrb[0].mxu0
        %v1821 = vadd.f32 0.0, %v1820
        %v1822 = vpop.f32.mrb[0].mxu0
        %v1823 = vadd.f32 0.0, %v1822
        %1824 = vdwg.mxu0
        %1825 = vmatprep.subr.mxu0 %v325
        %1826 = vmatpush1.msra.mxu0 %v324
        %1827 = vmatprep.subr.mxu0 %v1149
        %1828 = vmatpush1.msra.mxu0 %v1146
        %1829 = vmatprep.subr.mxu0 0.0
        %1830 = vmatpush1.msra.mxu0 0.0
        %1831 = vmatprep.subr.mxu0 0.0
        %1832 = vmatpush1.msra.mxu0 0.0
        %1833 = vmatprep.subr.mxu0 0.0
        %1834 = vmatpush1.msra.mxu0 0.0
        %1835 = vmatprep.subr.mxu0 0.0
        %1836 = vmatpush1.msra.mxu0 0.0
        %1837 = vmatprep.subr.mxu0 0.0
        %1838 = vmatpush1.msra.mxu0 0.0
        %1839 = vmatprep.subr.mxu0 0.0
        %1840 = vmatpush1.msra.mxu0 0.0
        %1841 = vmatprep.subr.mxu0 0.0
        %1842 = vmatpush1.msra.mxu0 0.0
        %1843 = vmatprep.subr.mxu0 0.0
        %1844 = vmatpush1.msra.mxu0 0.0
        %1845 = vmatprep.subr.mxu0 0.0
        %1846 = vmatpush1.msra.mxu0 0.0
        %1847 = vmatprep.subr.mxu0 0.0
        %1848 = vmatpush1.msra.mxu0 0.0
        %1849 = vmatprep.subr.mxu0 0.0
        %1850 = vmatpush1.msra.mxu0 0.0
        %1851 = vmatprep.subr.mxu0 0.0
        %1852 = vmatpush1.msra.mxu0 0.0
        %1853 = vmatprep.subr.mxu0 0.0
        %1854 = vmatpush1.msra.mxu0 0.0
        %1855 = vmatprep.subr.mxu0 0.0
        %1856 = vmatpush1.msra.mxu0 0.0
        %1857 = vmatprep.subr.mxu0 0.0
        %1858 = vmatpush1.msra.mxu0 0.0
        %1859 = vmatprep.subr.mxu0 0.0
        %1860 = vmatpush1.msra.mxu0 0.0
        %1861 = vmatprep.subr.mxu0 0.0
        %1862 = vmatpush1.msra.mxu0 0.0
        %1863 = vmatprep.subr.mxu0 0.0
        %1864 = vmatpush1.msra.mxu0 0.0
        %1865 = vmatprep.subr.mxu0 0.0
        %1866 = vmatpush1.msra.mxu0 0.0
        %1867 = vmatprep.subr.mxu0 0.0
        %1868 = vmatpush1.msra.mxu0 0.0
        %1869 = vmatprep.subr.mxu0 0.0
        %1870 = vmatpush1.msra.mxu0 0.0
        %1871 = vmatprep.subr.mxu0 0.0
        %1872 = vmatpush1.msra.mxu0 0.0
        %1873 = vmatprep.subr.mxu0 0.0
        %1874 = vmatpush1.msra.mxu0 0.0
        %1875 = vmatprep.subr.mxu0 0.0
        %1876 = vmatpush1.msra.mxu0 0.0
        %1877 = vmatprep.subr.mxu0 0.0
        %1878 = vmatpush1.msra.mxu0 0.0
        %1879 = vmatprep.subr.mxu0 0.0
        %1880 = vmatpush1.msra.mxu0 0.0
        %1881 = vmatprep.subr.mxu0 0.0
        %1882 = vmatpush1.msra.mxu0 0.0
        %1883 = vmatprep.subr.mxu0 0.0
        %1884 = vmatpush1.msra.mxu0 0.0
        %1885 = vmatprep.subr.mxu0 0.0
        %1886 = vmatpush1.msra.mxu0 0.0
        %1887 = vmatprep.subr.mxu0 0.0
        %1888 = vmatpush1.msra.mxu0 0.0
        %1889 = vmatprep.mubr.f32.mxu0 0.0
        %1890 = vmatmul.mubr.f32.gmra.mrb[0].mxu0 %v1725
        %v1891 = vpop.f32.mrb[0].mxu0
        %v1892 = vadd.f32 0.0, %v1891
        %v1893 = vpop.f32.mrb[0].mxu0
        %v1894 = vadd.f32 0.0, %v1893
        %1895 = vmatprep.mubr.f32.mxu0 0.0
        %1896 = vmatmul.mubr.f32.gmra.mrb[0].mxu0 %v1728
        %v1897 = vpop.f32.mrb[0].mxu0
        %v1898 = vadd.f32 0.0, %v1897
        %v1899 = vpop.f32.mrb[0].mxu0
        %v1900 = vadd.f32 0.0, %v1899
        %1901 = vmatprep.mubr.f32.mxu0 0.0
        %1902 = vmatmul.mubr.f32.gmra.mrb[0].mxu0 %v1731
        %v1903 = vpop.f32.mrb[0].mxu0
        %v1904 = vadd.f32 0.0, %v1903
        %v1905 = vpop.f32.mrb[0].mxu0
        %v1906 = vadd.f32 0.0, %v1905
        %1907 = vmatprep.mubr.f32.mxu0 0.0
        %1908 = vmatmul.mubr.f32.gmra.mrb[0].mxu0 %v1734
        %v1909 = vpop.f32.mrb[0].mxu0
        %v1910 = vadd.f32 0.0, %v1909
        %v1911 = vpop.f32.mrb[0].mxu0
        %v1912 = vadd.f32 0.0, %v1911
        %1913 = vdwg.mxu0
        %v1914 = vmul.f32 %v427, %v1218
        %v1915 = vmul.f32 %v429, %v1220
        %v1916 = vmul.f32 %v516, %v1307
        %v1917 = vmul.f32 %v518, %v1309
        %v1918 = vmul.f32 %v433, %v1224
        %v1919 = vmul.f32 %v435, %v1226
        %v1920 = vmul.f32 %v522, %v1313
        %v1921 = vmul.f32 %v524, %v1315
        %v1922 = vmul.f32 %v439, %v1230
        %v1923 = vmul.f32 %v441, %v1232
        %v1924 = vmul.f32 %v528, %v1319
        %v1925 = vmul.f32 %v530, %v1321
        %v1926 = vmul.f32 %v445, %v1236
        %v1927 = vmul.f32 %v447, %v1238
        %v1928 = vmul.f32 %v534, %v1325
        %v1929 = vmul.f32 %v536, %v1327
        %v1930 = vmul.f32 %v817, %v1803
        %v1931 = vmul.f32 %v819, %v1805
        %v1932 = vmul.f32 %v906, %v1892
        %v1933 = vmul.f32 %v908, %v1894
        %v1934 = vmul.f32 %v823, %v1809
        %v1935 = vmul.f32 %v825, %v1811
        %v1936 = vmul.f32 %v912, %v1898
        %v1937 = vmul.f32 %v914, %v1900
        %v1938 = vmul.f32 %v829, %v1815
        %v1939 = vmul.f32 %v831, %v1817
        %v1940 = vmul.f32 %v918, %v1904
        %v1941 = vmul.f32 %v920, %v1906
        %v1942 = vmul.f32 %v835, %v1821
        %v1943 = vmul.f32 %v837, %v1823
        %v1944 = vmul.f32 %v924, %v1910
        %v1945 = vmul.f32 %v926, %v1912
        %v1946 = vmul.f32 %v1012, %v1608
        %v1947 = vmul.f32 %v1014, %v1610
        %v1948 = vmul.f32 %v1101, %v1697
        %v1949 = vmul.f32 %v1103, %v1699
        %v1950 = vmul.f32 %v1018, %v1614
        %v1951 = vmul.f32 %v1020, %v1616
        %v1952 = vmul.f32 %v1107, %v1703
        %v1953 = vmul.f32 %v1109, %v1705
        %v1954 = vmul.f32 %v1024, %v1620
        %v1955 = vmul.f32 %v1026, %v1622
        %v1956 = vmul.f32 %v1113, %v1709
        %v1957 = vmul.f32 %v1115, %v1711
        %v1958 = vmul.f32 %v1030, %v1626
        %v1959 = vmul.f32 %v1032, %v1628
        %v1960 = vmul.f32 %v1119, %v1715
        %v1961 = vmul.f32 %v1121, %v1717
        %v1962 = vsub.f32 %v1930, %v1946
        %v1963 = vsub.f32 %v1931, %v1947
        %v1964 = vsub.f32 %v1932, %v1948
        %v1965 = vsub.f32 %v1933, %v1949
        %v1966 = vsub.f32 %v1934, %v1950
        %v1967 = vsub.f32 %v1935, %v1951
        %v1968 = vsub.f32 %v1936, %v1952
        %v1969 = vsub.f32 %v1937, %v1953
        %v1970 = vsub.f32 %v1938, %v1954
        %v1971 = vsub.f32 %v1939, %v1955
        %v1972 = vsub.f32 %v1940, %v1956
        %v1973 = vsub.f32 %v1941, %v1957
        %v1974 = vsub.f32 %v1942, %v1958
        %v1975 = vsub.f32 %v1943, %v1959
        %v1976 = vsub.f32 %v1944, %v1960
        %v1977 = vsub.f32 %v1945, %v1961
        %v1978 = vmul.f32 %v1012, %v1413
        %v1979 = vmul.f32 %v1014, %v1415
        %v1980 = vmul.f32 %v1101, %v1502
        %v1981 = vmul.f32 %v1103, %v1504
        %v1982 = vmul.f32 %v1018, %v1419
        %v1983 = vmul.f32 %v1020, %v1421
        %v1984 = vmul.f32 %v1107, %v1508
        %v1985 = vmul.f32 %v1109, %v1510
        %v1986 = vmul.f32 %v1024, %v1425
        %v1987 = vmul.f32 %v1026, %v1427
        %v1988 = vmul.f32 %v1113, %v1514
        %v1989 = vmul.f32 %v1115, %v1516
        %v1990 = vmul.f32 %v1030, %v1431
        %v1991 = vmul.f32 %v1032, %v1433
        %v1992 = vmul.f32 %v1119, %v1520
        %v1993 = vmul.f32 %v1121, %v1522
        %v1994 = vmul.f32 %v622, %v1803
        %v1995 = vmul.f32 %v624, %v1805
        %v1996 = vmul.f32 %v711, %v1892
        %v1997 = vmul.f32 %v713, %v1894
        %v1998 = vmul.f32 %v628, %v1809
        %v1999 = vmul.f32 %v630, %v1811
        %v2000 = vmul.f32 %v717, %v1898
        %v2001 = vmul.f32 %v719, %v1900
        %v2002 = vmul.f32 %v634, %v1815
        %v2003 = vmul.f32 %v636, %v1817
        %v2004 = vmul.f32 %v723, %v1904
        %v2005 = vmul.f32 %v725, %v1906
        %v2006 = vmul.f32 %v640, %v1821
        %v2007 = vmul.f32 %v642, %v1823
        %v2008 = vmul.f32 %v729, %v1910
        %v2009 = vmul.f32 %v731, %v1912
        %v2010 = vsub.f32 %v1978, %v1994
        %v2011 = vsub.f32 %v1979, %v1995
        %v2012 = vsub.f32 %v1980, %v1996
        %v2013 = vsub.f32 %v1981, %v1997
        %v2014 = vsub.f32 %v1982, %v1998
        %v2015 = vsub.f32 %v1983, %v1999
        %v2016 = vsub.f32 %v1984, %v2000
        %v2017 = vsub.f32 %v1985, %v2001
        %v2018 = vsub.f32 %v1986, %v2002
        %v2019 = vsub.f32 %v1987, %v2003
        %v2020 = vsub.f32 %v1988, %v2004
        %v2021 = vsub.f32 %v1989, %v2005
        %v2022 = vsub.f32 %v1990, %v2006
        %v2023 = vsub.f32 %v1991, %v2007
        %v2024 = vsub.f32 %v1992, %v2008
        %v2025 = vsub.f32 %v1993, %v2009
        %v2026 = vmul.f32 %v622, %v1608
        %v2027 = vmul.f32 %v624, %v1610
        %v2028 = vmul.f32 %v711, %v1697
        %v2029 = vmul.f32 %v713, %v1699
        %v2030 = vmul.f32 %v628, %v1614
        %v2031 = vmul.f32 %v630, %v1616
        %v2032 = vmul.f32 %v717, %v1703
        %v2033 = vmul.f32 %v719, %v1705
        %v2034 = vmul.f32 %v634, %v1620
        %v2035 = vmul.f32 %v636, %v1622
        %v2036 = vmul.f32 %v723, %v1709
        %v2037 = vmul.f32 %v725, %v1711
        %v2038 = vmul.f32 %v640, %v1626
        %v2039 = vmul.f32 %v642, %v1628
        %v2040 = vmul.f32 %v729, %v1715
        %v2041 = vmul.f32 %v731, %v1717
        %v2042 = vmul.f32 %v817, %v1413
        %v2043 = vmul.f32 %v819, %v1415
        %v2044 = vmul.f32 %v906, %v1502
        %v2045 = vmul.f32 %v908, %v1504
        %v2046 = vmul.f32 %v823, %v1419
        %v2047 = vmul.f32 %v825, %v1421
        %v2048 = vmul.f32 %v912, %v1508
        %v2049 = vmul.f32 %v914, %v1510
        %v2050 = vmul.f32 %v829, %v1425
        %v2051 = vmul.f32 %v831, %v1427
        %v2052 = vmul.f32 %v918, %v1514
        %v2053 = vmul.f32 %v920, %v1516
        %v2054 = vmul.f32 %v835, %v1431
        %v2055 = vmul.f32 %v837, %v1433
        %v2056 = vmul.f32 %v924, %v1520
        %v2057 = vmul.f32 %v926, %v1522
        %v2058 = vsub.f32 %v2026, %v2042
        %v2059 = vsub.f32 %v2027, %v2043
        %v2060 = vsub.f32 %v2028, %v2044
        %v2061 = vsub.f32 %v2029, %v2045
        %v2062 = vsub.f32 %v2030, %v2046
        %v2063 = vsub.f32 %v2031, %v2047
        %v2064 = vsub.f32 %v2032, %v2048
        %v2065 = vsub.f32 %v2033, %v2049
        %v2066 = vsub.f32 %v2034, %v2050
        %v2067 = vsub.f32 %v2035, %v2051
        %v2068 = vsub.f32 %v2036, %v2052
        %v2069 = vsub.f32 %v2037, %v2053
        %v2070 = vsub.f32 %v2038, %v2054
        %v2071 = vsub.f32 %v2039, %v2055
        %v2072 = vsub.f32 %v2040, %v2056
        %v2073 = vsub.f32 %v2041, %v2057
        %v2074 = vld [vmem:[%s4] sm:$0xff]
        %v2075 = vld [vmem:[%s4 + $0x8] sm:$0x1]
        %s2076 = scalar_lea.vmem %s4, 16
        %v2077 = vld [vmem:[%s2076] sm:$0xff]
        %v2078 = vld [vmem:[%s2076 + $0x8] sm:$0x1]
        %vm2079 = vcmask 244736
        %v2081 = vsel %vm2079, %v2077, 0
        %v2084 = vsel %vm2079, %v2078, 0
        %vm2086 = vcmask 1045504
        %v2088 = vsel %vm2086, %v1974, 0
        %v2091 = vsel %vm2086, %v1975, 0
        %v2094 = vsel %vm2086, %v1976, 0
        %v2097 = vsel %vm2086, %v1977, 0
        %2099 = vmatprep.subr.mxu0 %v1963
        %2100 = vmatpush1.msra.mxu0 %v1962
        %2101 = vmatprep.subr.mxu0 %v1967
        %2102 = vmatpush1.msra.mxu0 %v1966
        %2103 = vmatprep.subr.mxu0 %v1971
        %2104 = vmatpush1.msra.mxu0 %v1970
        %2105 = vmatprep.subr.mxu0 %v2091
        %2106 = vmatpush1.msra.mxu0 %v2088
        %2107 = vmatprep.subr.mxu0 0.0
        %2108 = vmatpush1.msra.mxu0 0.0
        %2109 = vmatprep.subr.mxu0 0.0
        %2110 = vmatpush1.msra.mxu0 0.0
        %2111 = vmatprep.subr.mxu0 0.0
        %2112 = vmatpush1.msra.mxu0 0.0
        %2113 = vmatprep.subr.mxu0 0.0
        %2114 = vmatpush1.msra.mxu0 0.0
        %2115 = vmatprep.subr.mxu0 0.0
        %2116 = vmatpush1.msra.mxu0 0.0
        %2117 = vmatprep.subr.mxu0 0.0
        %2118 = vmatpush1.msra.mxu0 0.0
        %2119 = vmatprep.subr.mxu0 0.0
        %2120 = vmatpush1.msra.mxu0 0.0
        %2121 = vmatprep.subr.mxu0 0.0
        %2122 = vmatpush1.msra.mxu0 0.0
        %2123 = vmatprep.subr.mxu0 0.0
        %2124 = vmatpush1.msra.mxu0 0.0
        %2125 = vmatprep.subr.mxu0 0.0
        %2126 = vmatpush1.msra.mxu0 0.0
        %2127 = vmatprep.subr.mxu0 0.0
        %2128 = vmatpush1.msra.mxu0 0.0
        %2129 = vmatprep.subr.mxu0 0.0
        %2130 = vmatpush1.msra.mxu0 0.0
        %2131 = vmatprep.subr.mxu0 0.0
        %2132 = vmatpush1.msra.mxu0 0.0
        %2133 = vmatprep.subr.mxu0 0.0
        %2134 = vmatpush1.msra.mxu0 0.0
        %2135 = vmatprep.subr.mxu0 0.0
        %2136 = vmatpush1.msra.mxu0 0.0
        %2137 = vmatprep.subr.mxu0 0.0
        %2138 = vmatpush1.msra.mxu0 0.0
        %2139 = vmatprep.subr.mxu0 0.0
        %2140 = vmatpush1.msra.mxu0 0.0
        %2141 = vmatprep.subr.mxu0 0.0
        %2142 = vmatpush1.msra.mxu0 0.0
        %2143 = vmatprep.subr.mxu0 0.0
        %2144 = vmatpush1.msra.mxu0 0.0
        %2145 = vmatprep.subr.mxu0 0.0
        %2146 = vmatpush1.msra.mxu0 0.0
        %2147 = vmatprep.subr.mxu0 0.0
        %2148 = vmatpush1.msra.mxu0 0.0
        %2149 = vmatprep.subr.mxu0 0.0
        %2150 = vmatpush1.msra.mxu0 0.0
        %2151 = vmatprep.subr.mxu0 0.0
        %2152 = vmatpush1.msra.mxu0 0.0
        %2153 = vmatprep.subr.mxu0 0.0
        %2154 = vmatpush1.msra.mxu0 0.0
        %2155 = vmatprep.subr.mxu0 0.0
        %2156 = vmatpush1.msra.mxu0 0.0
        %2157 = vmatprep.subr.mxu0 0.0
        %2158 = vmatpush1.msra.mxu0 0.0
        %2159 = vmatprep.subr.mxu0 0.0
        %2160 = vmatpush1.msra.mxu0 0.0
        %2161 = vmatprep.subr.mxu0 0.0
        %2162 = vmatpush1.msra.mxu0 0.0
        %2163 = vmatprep.mubr.f32.mxu0 0.0
        %2164 = vmatmul.mubr.f32.gmra.mrb[0].mxu0 %v2081
        %v2165 = vpop.f32.mrb[0].mxu0
        %v2166 = vadd.f32 0.0, %v2165
        %v2167 = vpop.f32.mrb[0].mxu0
        %v2168 = vadd.f32 0.0, %v2167
        %2169 = vmatprep.mubr.f32.mxu0 0.0
        %2170 = vmatmul.mubr.f32.gmra.mrb[0].mxu0 %v2084
        %v2171 = vpop.f32.mrb[0].mxu0
        %v2172 = vadd.f32 0.0, %v2171
        %v2173 = vpop.f32.mrb[0].mxu0
        %v2174 = vadd.f32 0.0, %v2173
        %2175 = vdwg.mxu0
        %2176 = vmatprep.subr.mxu0 %v1965
        %2177 = vmatpush1.msra.mxu0 %v1964
        %2178 = vmatprep.subr.mxu0 %v1969
        %2179 = vmatpush1.msra.mxu0 %v1968
        %2180 = vmatprep.subr.mxu0 %v1973
        %2181 = vmatpush1.msra.mxu0 %v1972
        %2182 = vmatprep.subr.mxu0 %v2097
        %2183 = vmatpush1.msra.mxu0 %v2094
        %2184 = vmatprep.subr.mxu0 0.0
        %2185 = vmatpush1.msra.mxu0 0.0
        %2186 = vmatprep.subr.mxu0 0.0
        %2187 = vmatpush1.msra.mxu0 0.0
        %2188 = vmatprep.subr.mxu0 0.0
        %2189 = vmatpush1.msra.mxu0 0.0
        %2190 = vmatprep.subr.mxu0 0.0
        %2191 = vmatpush1.msra.mxu0 0.0
        %2192 = vmatprep.subr.mxu0 0.0
        %2193 = vmatpush1.msra.mxu0 0.0
        %2194 = vmatprep.subr.mxu0 0.0
        %2195 = vmatpush1.msra.mxu0 0.0
        %2196 = vmatprep.subr.mxu0 0.0
        %2197 = vmatpush1.msra.mxu0 0.0
        %2198 = vmatprep.subr.mxu0 0.0
        %2199 = vmatpush1.msra.mxu0 0.0
        %2200 = vmatprep.subr.mxu0 0.0
        %2201 = vmatpush1.msra.mxu0 0.0
        %2202 = vmatprep.subr.mxu0 0.0
        %2203 = vmatpush1.msra.mxu0 0.0
        %2204 = vmatprep.subr.mxu0 0.0
        %2205 = vmatpush1.msra.mxu0 0.0
        %2206 = vmatprep.subr.mxu0 0.0
        %2207 = vmatpush1.msra.mxu0 0.0
        %2208 = vmatprep.subr.mxu0 0.0
        %2209 = vmatpush1.msra.mxu0 0.0
        %2210 = vmatprep.subr.mxu0 0.0
        %2211 = vmatpush1.msra.mxu0 0.0
        %2212 = vmatprep.subr.mxu0 0.0
        %2213 = vmatpush1.msra.mxu0 0.0
        %2214 = vmatprep.subr.mxu0 0.0
        %2215 = vmatpush1.msra.mxu0 0.0
        %2216 = vmatprep.subr.mxu0 0.0
        %2217 = vmatpush1.msra.mxu0 0.0
        %2218 = vmatprep.subr.mxu0 0.0
        %2219 = vmatpush1.msra.mxu0 0.0
        %2220 = vmatprep.subr.mxu0 0.0
        %2221 = vmatpush1.msra.mxu0 0.0
        %2222 = vmatprep.subr.mxu0 0.0
        %2223 = vmatpush1.msra.mxu0 0.0
        %2224 = vmatprep.subr.mxu0 0.0
        %2225 = vmatpush1.msra.mxu0 0.0
        %2226 = vmatprep.subr.mxu0 0.0
        %2227 = vmatpush1.msra.mxu0 0.0
        %2228 = vmatprep.subr.mxu0 0.0
        %2229 = vmatpush1.msra.mxu0 0.0
        %2230 = vmatprep.subr.mxu0 0.0
        %2231 = vmatpush1.msra.mxu0 0.0
        %2232 = vmatprep.subr.mxu0 0.0
        %2233 = vmatpush1.msra.mxu0 0.0
        %2234 = vmatprep.subr.mxu0 0.0
        %2235 = vmatpush1.msra.mxu0 0.0
        %2236 = vmatprep.subr.mxu0 0.0
        %2237 = vmatpush1.msra.mxu0 0.0
        %2238 = vmatprep.subr.mxu0 0.0
        %2239 = vmatpush1.msra.mxu0 0.0
        %2240 = vmatprep.mubr.f32.mxu0 0.0
        %2241 = vmatmul.mubr.f32.gmra.mrb[0].mxu0 %v2081
        %v2242 = vpop.f32.mrb[0].mxu0
        %v2243 = vadd.f32 0.0, %v2242
        %v2244 = vpop.f32.mrb[0].mxu0
        %v2245 = vadd.f32 0.0, %v2244
        %2246 = vmatprep.mubr.f32.mxu0 0.0
        %2247 = vmatmul.mubr.f32.gmra.mrb[0].mxu0 %v2084
        %v2248 = vpop.f32.mrb[0].mxu0
        %v2249 = vadd.f32 0.0, %v2248
        %v2250 = vpop.f32.mrb[0].mxu0
        %v2251 = vadd.f32 0.0, %v2250
        %2252 = vdwg.mxu0
        %v2254 = vsel %vm2079, %v2074, 0
        %v2257 = vsel %vm2079, %v2075, 0
        %v2260 = vsel %vm2086, %v1926, 0
        %v2263 = vsel %vm2086, %v1927, 0
        %v2266 = vsel %vm2086, %v1928, 0
        %v2269 = vsel %vm2086, %v1929, 0
        %2271 = vmatprep.subr.mxu0 %v1915
        %2272 = vmatpush1.msra.mxu0 %v1914
        %2273 = vmatprep.subr.mxu0 %v1919
        %2274 = vmatpush1.msra.mxu0 %v1918
        %2275 = vmatprep.subr.mxu0 %v1923
        %2276 = vmatpush1.msra.mxu0 %v1922
        %2277 = vmatprep.subr.mxu0 %v2263
        %2278 = vmatpush1.msra.mxu0 %v2260
        %2279 = vmatprep.subr.mxu0 0.0
        %2280 = vmatpush1.msra.mxu0 0.0
        %2281 = vmatprep.subr.mxu0 0.0
        %2282 = vmatpush1.msra.mxu0 0.0
        %2283 = vmatprep.subr.mxu0 0.0
        %2284 = vmatpush1.msra.mxu0 0.0
        %2285 = vmatprep.subr.mxu0 0.0
        %2286 = vmatpush1.msra.mxu0 0.0
        %2287 = vmatprep.subr.mxu0 0.0
        %2288 = vmatpush1.msra.mxu0 0.0
        %2289 = vmatprep.subr.mxu0 0.0
        %2290 = vmatpush1.msra.mxu0 0.0
        %2291 = vmatprep.subr.mxu0 0.0
        %2292 = vmatpush1.msra.mxu0 0.0
        %2293 = vmatprep.subr.mxu0 0.0
        %2294 = vmatpush1.msra.mxu0 0.0
        %2295 = vmatprep.subr.mxu0 0.0
        %2296 = vmatpush1.msra.mxu0 0.0
        %2297 = vmatprep.subr.mxu0 0.0
        %2298 = vmatpush1.msra.mxu0 0.0
        %2299 = vmatprep.subr.mxu0 0.0
        %2300 = vmatpush1.msra.mxu0 0.0
        %2301 = vmatprep.subr.mxu0 0.0
        %2302 = vmatpush1.msra.mxu0 0.0
        %2303 = vmatprep.subr.mxu0 0.0
        %2304 = vmatpush1.msra.mxu0 0.0
        %2305 = vmatprep.subr.mxu0 0.0
        %2306 = vmatpush1.msra.mxu0 0.0
        %2307 = vmatprep.subr.mxu0 0.0
        %2308 = vmatpush1.msra.mxu0 0.0
        %2309 = vmatprep.subr.mxu0 0.0
        %2310 = vmatpush1.msra.mxu0 0.0
        %2311 = vmatprep.subr.mxu0 0.0
        %2312 = vmatpush1.msra.mxu0 0.0
        %2313 = vmatprep.subr.mxu0 0.0
        %2314 = vmatpush1.msra.mxu0 0.0
        %2315 = vmatprep.subr.mxu0 0.0
        %2316 = vmatpush1.msra.mxu0 0.0
        %2317 = vmatprep.subr.mxu0 0.0
        %2318 = vmatpush1.msra.mxu0 0.0
        %2319 = vmatprep.subr.mxu0 0.0
        %2320 = vmatpush1.msra.mxu0 0.0
        %2321 = vmatprep.subr.mxu0 0.0
        %2322 = vmatpush1.msra.mxu0 0.0
        %2323 = vmatprep.subr.mxu0 0.0
        %2324 = vmatpush1.msra.mxu0 0.0
        %2325 = vmatprep.subr.mxu0 0.0
        %2326 = vmatpush1.msra.mxu0 0.0
        %2327 = vmatprep.subr.mxu0 0.0
        %2328 = vmatpush1.msra.mxu0 0.0
        %2329 = vmatprep.subr.mxu0 0.0
        %2330 = vmatpush1.msra.mxu0 0.0
        %2331 = vmatprep.subr.mxu0 0.0
        %2332 = vmatpush1.msra.mxu0 0.0
        %2333 = vmatprep.subr.mxu0 0.0
        %2334 = vmatpush1.msra.mxu0 0.0
        %2335 = vmatprep.mubr.f32.mxu0 0.0
        %2336 = vmatmul.mubr.f32.gmra.mrb[0].mxu0 %v2254
        %v2337 = vpop.f32.mrb[0].mxu0
        %v2338 = vadd.f32 %v2166, %v2337
        %v2339 = vpop.f32.mrb[0].mxu0
        %v2340 = vadd.f32 %v2168, %v2339
        %2341 = vmatprep.mubr.f32.mxu0 0.0
        %2342 = vmatmul.mubr.f32.gmra.mrb[0].mxu0 %v2257
        %v2343 = vpop.f32.mrb[0].mxu0
        %v2344 = vadd.f32 %v2172, %v2343
        %v2345 = vpop.f32.mrb[0].mxu0
        %v2346 = vadd.f32 %v2174, %v2345
        %2347 = vdwg.mxu0
        %2348 = vmatprep.subr.mxu0 %v1917
        %2349 = vmatpush1.msra.mxu0 %v1916
        %2350 = vmatprep.subr.mxu0 %v1921
        %2351 = vmatpush1.msra.mxu0 %v1920
        %2352 = vmatprep.subr.mxu0 %v1925
        %2353 = vmatpush1.msra.mxu0 %v1924
        %2354 = vmatprep.subr.mxu0 %v2269
        %2355 = vmatpush1.msra.mxu0 %v2266
        %2356 = vmatprep.subr.mxu0 0.0
        %2357 = vmatpush1.msra.mxu0 0.0
        %2358 = vmatprep.subr.mxu0 0.0
        %2359 = vmatpush1.msra.mxu0 0.0
        %2360 = vmatprep.subr.mxu0 0.0
        %2361 = vmatpush1.msra.mxu0 0.0
        %2362 = vmatprep.subr.mxu0 0.0
        %2363 = vmatpush1.msra.mxu0 0.0
        %2364 = vmatprep.subr.mxu0 0.0
        %2365 = vmatpush1.msra.mxu0 0.0
        %2366 = vmatprep.subr.mxu0 0.0
        %2367 = vmatpush1.msra.mxu0 0.0
        %2368 = vmatprep.subr.mxu0 0.0
        %2369 = vmatpush1.msra.mxu0 0.0
        %2370 = vmatprep.subr.mxu0 0.0
        %2371 = vmatpush1.msra.mxu0 0.0
        %2372 = vmatprep.subr.mxu0 0.0
        %2373 = vmatpush1.msra.mxu0 0.0
        %2374 = vmatprep.subr.mxu0 0.0
        %2375 = vmatpush1.msra.mxu0 0.0
        %2376 = vmatprep.subr.mxu0 0.0
        %2377 = vmatpush1.msra.mxu0 0.0
        %2378 = vmatprep.subr.mxu0 0.0
        %2379 = vmatpush1.msra.mxu0 0.0
        %2380 = vmatprep.subr.mxu0 0.0
        %2381 = vmatpush1.msra.mxu0 0.0
        %2382 = vmatprep.subr.mxu0 0.0
        %2383 = vmatpush1.msra.mxu0 0.0
        %2384 = vmatprep.subr.mxu0 0.0
        %2385 = vmatpush1.msra.mxu0 0.0
        %2386 = vmatprep.subr.mxu0 0.0
        %2387 = vmatpush1.msra.mxu0 0.0
        %2388 = vmatprep.subr.mxu0 0.0
        %2389 = vmatpush1.msra.mxu0 0.0
        %2390 = vmatprep.subr.mxu0 0.0
        %2391 = vmatpush1.msra.mxu0 0.0
        %2392 = vmatprep.subr.mxu0 0.0
        %2393 = vmatpush1.msra.mxu0 0.0
        %2394 = vmatprep.subr.mxu0 0.0
        %2395 = vmatpush1.msra.mxu0 0.0
        %2396 = vmatprep.subr.mxu0 0.0
        %2397 = vmatpush1.msra.mxu0 0.0
        %2398 = vmatprep.subr.mxu0 0.0
        %2399 = vmatpush1.msra.mxu0 0.0
        %2400 = vmatprep.subr.mxu0 0.0
        %2401 = vmatpush1.msra.mxu0 0.0
        %2402 = vmatprep.subr.mxu0 0.0
        %2403 = vmatpush1.msra.mxu0 0.0
        %2404 = vmatprep.subr.mxu0 0.0
        %2405 = vmatpush1.msra.mxu0 0.0
        %2406 = vmatprep.subr.mxu0 0.0
        %2407 = vmatpush1.msra.mxu0 0.0
        %2408 = vmatprep.subr.mxu0 0.0
        %2409 = vmatpush1.msra.mxu0 0.0
        %2410 = vmatprep.subr.mxu0 0.0
        %2411 = vmatpush1.msra.mxu0 0.0
        %2412 = vmatprep.mubr.f32.mxu0 0.0
        %2413 = vmatmul.mubr.f32.gmra.mrb[0].mxu0 %v2254
        %v2414 = vpop.f32.mrb[0].mxu0
        %v2415 = vadd.f32 %v2243, %v2414
        %v2416 = vpop.f32.mrb[0].mxu0
        %v2417 = vadd.f32 %v2245, %v2416
        %2418 = vmatprep.mubr.f32.mxu0 0.0
        %2419 = vmatmul.mubr.f32.gmra.mrb[0].mxu0 %v2257
        %v2420 = vpop.f32.mrb[0].mxu0
        %v2421 = vadd.f32 %v2249, %v2420
        %v2422 = vpop.f32.mrb[0].mxu0
        %v2423 = vadd.f32 %v2251, %v2422
        %2424 = vdwg.mxu0
        %s2425 = scalar_lea.vmem %s4, 32
        %v2426 = vld [vmem:[%s2425] sm:$0xff]
        %v2427 = vld [vmem:[%s2425 + $0x8] sm:$0x1]
        %v2429 = vsel %vm2079, %v2426, 0
        %v2432 = vsel %vm2079, %v2427, 0
        %v2435 = vsel %vm2086, %v2022, 0
        %v2438 = vsel %vm2086, %v2023, 0
        %v2441 = vsel %vm2086, %v2024, 0
        %v2444 = vsel %vm2086, %v2025, 0
        %2446 = vmatprep.subr.mxu0 %v2011
        %2447 = vmatpush1.msra.mxu0 %v2010
        %2448 = vmatprep.subr.mxu0 %v2015
        %2449 = vmatpush1.msra.mxu0 %v2014
        %2450 = vmatprep.subr.mxu0 %v2019
        %2451 = vmatpush1.msra.mxu0 %v2018
        %2452 = vmatprep.subr.mxu0 %v2438
        %2453 = vmatpush1.msra.mxu0 %v2435
        %2454 = vmatprep.subr.mxu0 0.0
        %2455 = vmatpush1.msra.mxu0 0.0
        %2456 = vmatprep.subr.mxu0 0.0
        %2457 = vmatpush1.msra.mxu0 0.0
        %2458 = vmatprep.subr.mxu0 0.0
        %2459 = vmatpush1.msra.mxu0 0.0
        %2460 = vmatprep.subr.mxu0 0.0
        %2461 = vmatpush1.msra.mxu0 0.0
        %2462 = vmatprep.subr.mxu0 0.0
        %2463 = vmatpush1.msra.mxu0 0.0
        %2464 = vmatprep.subr.mxu0 0.0
        %2465 = vmatpush1.msra.mxu0 0.0
        %2466 = vmatprep.subr.mxu0 0.0
        %2467 = vmatpush1.msra.mxu0 0.0
        %2468 = vmatprep.subr.mxu0 0.0
        %2469 = vmatpush1.msra.mxu0 0.0
        %2470 = vmatprep.subr.mxu0 0.0
        %2471 = vmatpush1.msra.mxu0 0.0
        %2472 = vmatprep.subr.mxu0 0.0
        %2473 = vmatpush1.msra.mxu0 0.0
        %2474 = vmatprep.subr.mxu0 0.0
        %2475 = vmatpush1.msra.mxu0 0.0
        %2476 = vmatprep.subr.mxu0 0.0
        %2477 = vmatpush1.msra.mxu0 0.0
        %2478 = vmatprep.subr.mxu0 0.0
        %2479 = vmatpush1.msra.mxu0 0.0
        %2480 = vmatprep.subr.mxu0 0.0
        %2481 = vmatpush1.msra.mxu0 0.0
        %2482 = vmatprep.subr.mxu0 0.0
        %2483 = vmatpush1.msra.mxu0 0.0
        %2484 = vmatprep.subr.mxu0 0.0
        %2485 = vmatpush1.msra.mxu0 0.0
        %2486 = vmatprep.subr.mxu0 0.0
        %2487 = vmatpush1.msra.mxu0 0.0
        %2488 = vmatprep.subr.mxu0 0.0
        %2489 = vmatpush1.msra.mxu0 0.0
        %2490 = vmatprep.subr.mxu0 0.0
        %2491 = vmatpush1.msra.mxu0 0.0
        %2492 = vmatprep.subr.mxu0 0.0
        %2493 = vmatpush1.msra.mxu0 0.0
        %2494 = vmatprep.subr.mxu0 0.0
        %2495 = vmatpush1.msra.mxu0 0.0
        %2496 = vmatprep.subr.mxu0 0.0
        %2497 = vmatpush1.msra.mxu0 0.0
        %2498 = vmatprep.subr.mxu0 0.0
        %2499 = vmatpush1.msra.mxu0 0.0
        %2500 = vmatprep.subr.mxu0 0.0
        %2501 = vmatpush1.msra.mxu0 0.0
        %2502 = vmatprep.subr.mxu0 0.0
        %2503 = vmatpush1.msra.mxu0 0.0
        %2504 = vmatprep.subr.mxu0 0.0
        %2505 = vmatpush1.msra.mxu0 0.0
        %2506 = vmatprep.subr.mxu0 0.0
        %2507 = vmatpush1.msra.mxu0 0.0
        %2508 = vmatprep.subr.mxu0 0.0
        %2509 = vmatpush1.msra.mxu0 0.0
        %2510 = vmatprep.mubr.f32.mxu0 0.0
        %2511 = vmatmul.mubr.f32.gmra.mrb[0].mxu0 %v2429
        %v2512 = vpop.f32.mrb[0].mxu0
        %v2513 = vadd.f32 0.0, %v2512
        %v2514 = vpop.f32.mrb[0].mxu0
        %v2515 = vadd.f32 0.0, %v2514
        %2516 = vmatprep.mubr.f32.mxu0 0.0
        %2517 = vmatmul.mubr.f32.gmra.mrb[0].mxu0 %v2432
        %v2518 = vpop.f32.mrb[0].mxu0
        %v2519 = vadd.f32 0.0, %v2518
        %v2520 = vpop.f32.mrb[0].mxu0
        %v2521 = vadd.f32 0.0, %v2520
        %2522 = vdwg.mxu0
        %2523 = vmatprep.subr.mxu0 %v2013
        %2524 = vmatpush1.msra.mxu0 %v2012
        %2525 = vmatprep.subr.mxu0 %v2017
        %2526 = vmatpush1.msra.mxu0 %v2016
        %2527 = vmatprep.subr.mxu0 %v2021
        %2528 = vmatpush1.msra.mxu0 %v2020
        %2529 = vmatprep.subr.mxu0 %v2444
        %2530 = vmatpush1.msra.mxu0 %v2441
        %2531 = vmatprep.subr.mxu0 0.0
        %2532 = vmatpush1.msra.mxu0 0.0
        %2533 = vmatprep.subr.mxu0 0.0
        %2534 = vmatpush1.msra.mxu0 0.0
        %2535 = vmatprep.subr.mxu0 0.0
        %2536 = vmatpush1.msra.mxu0 0.0
        %2537 = vmatprep.subr.mxu0 0.0
        %2538 = vmatpush1.msra.mxu0 0.0
        %2539 = vmatprep.subr.mxu0 0.0
        %2540 = vmatpush1.msra.mxu0 0.0
        %2541 = vmatprep.subr.mxu0 0.0
        %2542 = vmatpush1.msra.mxu0 0.0
        %2543 = vmatprep.subr.mxu0 0.0
        %2544 = vmatpush1.msra.mxu0 0.0
        %2545 = vmatprep.subr.mxu0 0.0
        %2546 = vmatpush1.msra.mxu0 0.0
        %2547 = vmatprep.subr.mxu0 0.0
        %2548 = vmatpush1.msra.mxu0 0.0
        %2549 = vmatprep.subr.mxu0 0.0
        %2550 = vmatpush1.msra.mxu0 0.0
        %2551 = vmatprep.subr.mxu0 0.0
        %2552 = vmatpush1.msra.mxu0 0.0
        %2553 = vmatprep.subr.mxu0 0.0
        %2554 = vmatpush1.msra.mxu0 0.0
        %2555 = vmatprep.subr.mxu0 0.0
        %2556 = vmatpush1.msra.mxu0 0.0
        %2557 = vmatprep.subr.mxu0 0.0
        %2558 = vmatpush1.msra.mxu0 0.0
        %2559 = vmatprep.subr.mxu0 0.0
        %2560 = vmatpush1.msra.mxu0 0.0
        %2561 = vmatprep.subr.mxu0 0.0
        %2562 = vmatpush1.msra.mxu0 0.0
        %2563 = vmatprep.subr.mxu0 0.0
        %2564 = vmatpush1.msra.mxu0 0.0
        %2565 = vmatprep.subr.mxu0 0.0
        %2566 = vmatpush1.msra.mxu0 0.0
        %2567 = vmatprep.subr.mxu0 0.0
        %2568 = vmatpush1.msra.mxu0 0.0
        %2569 = vmatprep.subr.mxu0 0.0
        %2570 = vmatpush1.msra.mxu0 0.0
        %2571 = vmatprep.subr.mxu0 0.0
        %2572 = vmatpush1.msra.mxu0 0.0
        %2573 = vmatprep.subr.mxu0 0.0
        %2574 = vmatpush1.msra.mxu0 0.0
        %2575 = vmatprep.subr.mxu0 0.0
        %2576 = vmatpush1.msra.mxu0 0.0
        %2577 = vmatprep.subr.mxu0 0.0
        %2578 = vmatpush1.msra.mxu0 0.0
        %2579 = vmatprep.subr.mxu0 0.0
        %2580 = vmatpush1.msra.mxu0 0.0
        %2581 = vmatprep.subr.mxu0 0.0
        %2582 = vmatpush1.msra.mxu0 0.0
        %2583 = vmatprep.subr.mxu0 0.0
        %2584 = vmatpush1.msra.mxu0 0.0
        %2585 = vmatprep.subr.mxu0 0.0
        %2586 = vmatpush1.msra.mxu0 0.0
        %2587 = vmatprep.mubr.f32.mxu0 0.0
        %2588 = vmatmul.mubr.f32.gmra.mrb[0].mxu0 %v2429
        %v2589 = vpop.f32.mrb[0].mxu0
        %v2590 = vadd.f32 0.0, %v2589
        %v2591 = vpop.f32.mrb[0].mxu0
        %v2592 = vadd.f32 0.0, %v2591
        %2593 = vmatprep.mubr.f32.mxu0 0.0
        %2594 = vmatmul.mubr.f32.gmra.mrb[0].mxu0 %v2432
        %v2595 = vpop.f32.mrb[0].mxu0
        %v2596 = vadd.f32 0.0, %v2595
        %v2597 = vpop.f32.mrb[0].mxu0
        %v2598 = vadd.f32 0.0, %v2597
        %2599 = vdwg.mxu0
        %v2600 = vadd.f32 %v2338, %v2513
        %v2601 = vadd.f32 %v2340, %v2515
        %v2602 = vadd.f32 %v2415, %v2590
        %v2603 = vadd.f32 %v2417, %v2592
        %v2604 = vadd.f32 %v2344, %v2519
        %v2605 = vadd.f32 %v2346, %v2521
        %v2606 = vadd.f32 %v2421, %v2596
        %v2607 = vadd.f32 %v2423, %v2598
        %s2608 = scalar_lea.vmem %s4, 48
        %v2609 = vld [vmem:[%s2608] sm:$0xff]
        %v2610 = vld [vmem:[%s2608 + $0x8] sm:$0x1]
        %v2612 = vsel %vm2079, %v2609, 0
        %v2615 = vsel %vm2079, %v2610, 0
        %v2618 = vsel %vm2086, %v2070, 0
        %v2621 = vsel %vm2086, %v2071, 0
        %v2624 = vsel %vm2086, %v2072, 0
        %v2627 = vsel %vm2086, %v2073, 0
        %2629 = vmatprep.subr.mxu0 %v2059
        %2630 = vmatpush1.msra.mxu0 %v2058
        %2631 = vmatprep.subr.mxu0 %v2063
        %2632 = vmatpush1.msra.mxu0 %v2062
        %2633 = vmatprep.subr.mxu0 %v2067
        %2634 = vmatpush1.msra.mxu0 %v2066
        %2635 = vmatprep.subr.mxu0 %v2621
        %2636 = vmatpush1.msra.mxu0 %v2618
        %2637 = vmatprep.subr.mxu0 0.0
        %2638 = vmatpush1.msra.mxu0 0.0
        %2639 = vmatprep.subr.mxu0 0.0
        %2640 = vmatpush1.msra.mxu0 0.0
        %2641 = vmatprep.subr.mxu0 0.0
        %2642 = vmatpush1.msra.mxu0 0.0
        %2643 = vmatprep.subr.mxu0 0.0
        %2644 = vmatpush1.msra.mxu0 0.0
        %2645 = vmatprep.subr.mxu0 0.0
        %2646 = vmatpush1.msra.mxu0 0.0
        %2647 = vmatprep.subr.mxu0 0.0
        %2648 = vmatpush1.msra.mxu0 0.0
        %2649 = vmatprep.subr.mxu0 0.0
        %2650 = vmatpush1.msra.mxu0 0.0
        %2651 = vmatprep.subr.mxu0 0.0
        %2652 = vmatpush1.msra.mxu0 0.0
        %2653 = vmatprep.subr.mxu0 0.0
        %2654 = vmatpush1.msra.mxu0 0.0
        %2655 = vmatprep.subr.mxu0 0.0
        %2656 = vmatpush1.msra.mxu0 0.0
        %2657 = vmatprep.subr.mxu0 0.0
        %2658 = vmatpush1.msra.mxu0 0.0
        %2659 = vmatprep.subr.mxu0 0.0
        %2660 = vmatpush1.msra.mxu0 0.0
        %2661 = vmatprep.subr.mxu0 0.0
        %2662 = vmatpush1.msra.mxu0 0.0
        %2663 = vmatprep.subr.mxu0 0.0
        %2664 = vmatpush1.msra.mxu0 0.0
        %2665 = vmatprep.subr.mxu0 0.0
        %2666 = vmatpush1.msra.mxu0 0.0
        %2667 = vmatprep.subr.mxu0 0.0
        %2668 = vmatpush1.msra.mxu0 0.0
        %2669 = vmatprep.subr.mxu0 0.0
        %2670 = vmatpush1.msra.mxu0 0.0
        %2671 = vmatprep.subr.mxu0 0.0
        %2672 = vmatpush1.msra.mxu0 0.0
        %2673 = vmatprep.subr.mxu0 0.0
        %2674 = vmatpush1.msra.mxu0 0.0
        %2675 = vmatprep.subr.mxu0 0.0
        %2676 = vmatpush1.msra.mxu0 0.0
        %2677 = vmatprep.subr.mxu0 0.0
        %2678 = vmatpush1.msra.mxu0 0.0
        %2679 = vmatprep.subr.mxu0 0.0
        %2680 = vmatpush1.msra.mxu0 0.0
        %2681 = vmatprep.subr.mxu0 0.0
        %2682 = vmatpush1.msra.mxu0 0.0
        %2683 = vmatprep.subr.mxu0 0.0
        %2684 = vmatpush1.msra.mxu0 0.0
        %2685 = vmatprep.subr.mxu0 0.0
        %2686 = vmatpush1.msra.mxu0 0.0
        %2687 = vmatprep.subr.mxu0 0.0
        %2688 = vmatpush1.msra.mxu0 0.0
        %2689 = vmatprep.subr.mxu0 0.0
        %2690 = vmatpush1.msra.mxu0 0.0
        %2691 = vmatprep.subr.mxu0 0.0
        %2692 = vmatpush1.msra.mxu0 0.0
        %2693 = vmatprep.mubr.f32.mxu0 0.0
        %2694 = vmatmul.mubr.f32.gmra.mrb[0].mxu0 %v2612
        %v2695 = vpop.f32.mrb[0].mxu0
        %v2696 = vadd.f32 0.0, %v2695
        %v2697 = vpop.f32.mrb[0].mxu0
        %v2698 = vadd.f32 0.0, %v2697
        %2699 = vmatprep.mubr.f32.mxu0 0.0
        %2700 = vmatmul.mubr.f32.gmra.mrb[0].mxu0 %v2615
        %v2701 = vpop.f32.mrb[0].mxu0
        %v2702 = vadd.f32 0.0, %v2701
        %v2703 = vpop.f32.mrb[0].mxu0
        %v2704 = vadd.f32 0.0, %v2703
        %2705 = vdwg.mxu0
        %2706 = vmatprep.subr.mxu0 %v2061
        %2707 = vmatpush1.msra.mxu0 %v2060
        %2708 = vmatprep.subr.mxu0 %v2065
        %2709 = vmatpush1.msra.mxu0 %v2064
        %2710 = vmatprep.subr.mxu0 %v2069
        %2711 = vmatpush1.msra.mxu0 %v2068
        %2712 = vmatprep.subr.mxu0 %v2627
        %2713 = vmatpush1.msra.mxu0 %v2624
        %2714 = vmatprep.subr.mxu0 0.0
        %2715 = vmatpush1.msra.mxu0 0.0
        %2716 = vmatprep.subr.mxu0 0.0
        %2717 = vmatpush1.msra.mxu0 0.0
        %2718 = vmatprep.subr.mxu0 0.0
        %2719 = vmatpush1.msra.mxu0 0.0
        %2720 = vmatprep.subr.mxu0 0.0
        %2721 = vmatpush1.msra.mxu0 0.0
        %2722 = vmatprep.subr.mxu0 0.0
        %2723 = vmatpush1.msra.mxu0 0.0
        %2724 = vmatprep.subr.mxu0 0.0
        %2725 = vmatpush1.msra.mxu0 0.0
        %2726 = vmatprep.subr.mxu0 0.0
        %2727 = vmatpush1.msra.mxu0 0.0
        %2728 = vmatprep.subr.mxu0 0.0
        %2729 = vmatpush1.msra.mxu0 0.0
        %2730 = vmatprep.subr.mxu0 0.0
        %2731 = vmatpush1.msra.mxu0 0.0
        %2732 = vmatprep.subr.mxu0 0.0
        %2733 = vmatpush1.msra.mxu0 0.0
        %2734 = vmatprep.subr.mxu0 0.0
        %2735 = vmatpush1.msra.mxu0 0.0
        %2736 = vmatprep.subr.mxu0 0.0
        %2737 = vmatpush1.msra.mxu0 0.0
        %2738 = vmatprep.subr.mxu0 0.0
        %2739 = vmatpush1.msra.mxu0 0.0
        %2740 = vmatprep.subr.mxu0 0.0
        %2741 = vmatpush1.msra.mxu0 0.0
        %2742 = vmatprep.subr.mxu0 0.0
        %2743 = vmatpush1.msra.mxu0 0.0
        %2744 = vmatprep.subr.mxu0 0.0
        %2745 = vmatpush1.msra.mxu0 0.0
        %2746 = vmatprep.subr.mxu0 0.0
        %2747 = vmatpush1.msra.mxu0 0.0
        %2748 = vmatprep.subr.mxu0 0.0
        %2749 = vmatpush1.msra.mxu0 0.0
        %2750 = vmatprep.subr.mxu0 0.0
        %2751 = vmatpush1.msra.mxu0 0.0
        %2752 = vmatprep.subr.mxu0 0.0
        %2753 = vmatpush1.msra.mxu0 0.0
        %2754 = vmatprep.subr.mxu0 0.0
        %2755 = vmatpush1.msra.mxu0 0.0
        %2756 = vmatprep.subr.mxu0 0.0
        %2757 = vmatpush1.msra.mxu0 0.0
        %2758 = vmatprep.subr.mxu0 0.0
        %2759 = vmatpush1.msra.mxu0 0.0
        %2760 = vmatprep.subr.mxu0 0.0
        %2761 = vmatpush1.msra.mxu0 0.0
        %2762 = vmatprep.subr.mxu0 0.0
        %2763 = vmatpush1.msra.mxu0 0.0
        %2764 = vmatprep.subr.mxu0 0.0
        %2765 = vmatpush1.msra.mxu0 0.0
        %2766 = vmatprep.subr.mxu0 0.0
        %2767 = vmatpush1.msra.mxu0 0.0
        %2768 = vmatprep.subr.mxu0 0.0
        %2769 = vmatpush1.msra.mxu0 0.0
        %2770 = vmatprep.mubr.f32.mxu0 0.0
        %2771 = vmatmul.mubr.f32.gmra.mrb[0].mxu0 %v2612
        %v2772 = vpop.f32.mrb[0].mxu0
        %v2773 = vadd.f32 0.0, %v2772
        %v2774 = vpop.f32.mrb[0].mxu0
        %v2775 = vadd.f32 0.0, %v2774
        %2776 = vmatprep.mubr.f32.mxu0 0.0
        %2777 = vmatmul.mubr.f32.gmra.mrb[0].mxu0 %v2615
        %v2778 = vpop.f32.mrb[0].mxu0
        %v2779 = vadd.f32 0.0, %v2778
        %v2780 = vpop.f32.mrb[0].mxu0
        %v2781 = vadd.f32 0.0, %v2780
        %2782 = vdwg.mxu0
        %v2783 = vadd.f32 %v2600, %v2696
        %v2784 = vadd.f32 %v2601, %v2698
        %v2785 = vadd.f32 %v2602, %v2773
        %v2786 = vadd.f32 %v2603, %v2775
        %v2787 = vadd.f32 %v2604, %v2702
        %v2788 = vadd.f32 %v2605, %v2704
        %v2789 = vadd.f32 %v2606, %v2779
        %v2790 = vadd.f32 %v2607, %v2781
        %2791 = vst [vmem:[%s310] sm:$0xff] %v2783
        %2792 = vst [vmem:[%s310 + $0x8] sm:$0xff] %v2784
        %2793 = vst [vmem:[%s310 + $0x10] sm:$0xff] %v2785
        %2794 = vst [vmem:[%s310 + $0x18] sm:$0xff] %v2786
        %2795 = vst [vmem:[%s310 + $0x20] sm:$0x1] %v2787
        %2796 = vst [vmem:[%s310 + $0x28] sm:$0x1] %v2788
        %2797 = vst [vmem:[%s310 + $0x30] sm:$0x1] %v2789
        %2798 = vst [vmem:[%s310 + $0x38] sm:$0x1] %v2790
        %s2799 = sand.u32 %s142, 1
        %s2800 = scalar_lea.sflag [#allocation5], %s2799
        %s2801 = sand.u32 %s142, 1
        %s2802 = smul.addr %s2801, 64
        %s2803 = scalar_lea.vmem [#allocation4], %s2802
        // Predicated region
        $region87: #{tpu_custom_call.1} parent=77 // pred_check
          %p2804 = pneg %p152
        $region88: #{tpu_custom_call.1} parent=77 // pred_check_branch
          %2806 = sbr.rel (%p2804) target = $region90
        $region89: #{tpu_custom_call.1} parent=77 // pred_region
          %s2807 = smul.u32 4, %s19
          %s2809 = ssub.s32 1024, 1024
          %2810 = vsyncadd %s2800, %s2809
          %s2811 = smul.addr %s2807, 128
          %s2812 = scalar_lea.hbm %s5, %s2811
          %s2813 = sshll.u32 %s2803, 4
          %s2814 = int_to_ptr.vmem [resolvable:$true] %s2813
          %2819 = dma.vmem_to_hbm [thread:$0]  %s2814, 1024, %s2812, %s2800, 512, 1024, 32
        $region90: #{tpu_custom_call.1} parent=77 // pred_fallthru
          _
      $region78: #{tpu_custom_call.1} parent=5 // pred_fallthru
        _
      %p2820 = scmp.le.s32.totalorder 2, %s14
      // Predicated region
      $region91: #{tpu_custom_call.1} parent=5 // pred_check
        %p2821 = pneg %p2820
      $region92: #{tpu_custom_call.1} parent=5 // pred_check_branch
        %2823 = sbr.rel (%p2821) target = $region94
      $region93: #{tpu_custom_call.1} parent=5 // pred_region
        %s2824 = ssub.s32 %s14, 2
        // Predicated region
        $region95: #{tpu_custom_call.1} parent=93 // pred_check
          %p2825 = pneg %p158
        $region96: #{tpu_custom_call.1} parent=93 // pred_check_branch
          %2827 = sbr.rel (%p2825) target = $region98
        $region97: #{tpu_custom_call.1} parent=93 // pred_region
          %s2828 = sand.u32 %s143, 1
          %s2829 = scalar_lea.sflag [#allocation5], %s2828
          %s2830 = sand.u32 %s143, 1
          %s2831 = smul.addr %s2830, 64
          %s2832 = scalar_lea.vmem [#allocation4], %s2831
          %2833 = dma.done %s2829, 1024
        $region98: #{tpu_custom_call.1} parent=93 // pred_fallthru
          _
      $region94: #{tpu_custom_call.1} parent=5 // pred_fallthru
        _
    $region6: #{tpu_custom_call.1} parent=1 // loop_footer
      %s18 = sadd.s32 1, %s14
    $region7: #{tpu_custom_call.1} parent=1 // loop_footer_branch
      %13 = sbr.rel target = $region3
    $region8: #{tpu_custom_call.1} parent=1 // loop_exit
      _
    %2834 = vsyncpa [#allocation5], 1
    %s2835 = scalar_lea.sflag [#allocation5], 1
    %2836 = vsyncpa %s2835, 1

</llo_original>
